<compile_context>
chip_gen: v7x
topology: tpu7x:2x2x1
jax: 0.10.0
libtpu: 0.0.40
codegen_flags: <defaults>
</compile_context>

<pallas_src>
import functools
import math

import jax
import jax.numpy as jnp
from jax.experimental import pallas as pl
from jax.experimental.pallas import tpu as pltpu


def round_up(x, m):
    return (x + m - 1) // m * m


# ----------------------------------------------------------------------------
# Pallas kernels
# ----------------------------------------------------------------------------
def _mm_kernel(*refs, apply_relu, has_bias):
    """Tiled matmul with K-accumulation; fused bias + optional ReLU epilogue."""
    if has_bias:
        a_ref, b_ref, bias_ref, o_ref, acc_ref = refs
    else:
        a_ref, b_ref, o_ref, acc_ref = refs
        bias_ref = None

    @pl.when(pl.program_id(2) == 0)
    def _():
        acc_ref[...] = jnp.zeros_like(acc_ref)

    acc_ref[...] += jnp.dot(a_ref[...], b_ref[...],
                            preferred_element_type=jnp.float32)

    @pl.when(pl.program_id(2) == pl.num_programs(2) - 1)
    def _():
        r = acc_ref[...]
        if has_bias:
            r = r + bias_ref[...]           # (1, tn) broadcasts over rows
        if apply_relu:
            r = jnp.maximum(r, 0.0)
        o_ref[...] = r.astype(o_ref.dtype)


@functools.lru_cache(maxsize=None)
def _build_matmul(Mp, Kp, Np, tm, tk, tn, has_bias, apply_relu, out_dtype):
    kernel = functools.partial(_mm_kernel, apply_relu=apply_relu,
                               has_bias=has_bias)
    in_specs = [
        pl.BlockSpec((tm, tk), lambda i, j, k: (i, k)),
        pl.BlockSpec((tk, tn), lambda i, j, k: (k, j)),
    ]
    if has_bias:
        in_specs.append(pl.BlockSpec((1, tn), lambda i, j, k: (0, j)))
    return pl.pallas_call(
        kernel,
        out_shape=jax.ShapeDtypeStruct((Mp, Np), out_dtype),
        grid_spec=pltpu.PrefetchScalarGridSpec(
            num_scalar_prefetch=0,
            grid=(Mp // tm, Np // tn, Kp // tk),
            in_specs=in_specs,
            out_specs=pl.BlockSpec((tm, tn), lambda i, j, k: (i, j)),
            scratch_shapes=[pltpu.VMEM((tm, tn), jnp.float32)],
        ),
        compiler_params=pltpu.CompilerParams(
            dimension_semantics=("parallel", "parallel", "arbitrary"),
            vmem_limit_bytes=48 * 1024 * 1024,
        ),
    )


def matmul_bias_act(a, b, bias=None, apply_relu=False, out_dtype=jnp.bfloat16):
    """out = act(a @ b + bias).  a:(M,K), b:(K,N) cast to bf16; f32 accumulation."""
    M, K = a.shape
    K2, N = b.shape
    assert K == K2

    if M >= 512:
        # Big-M conv layers: square-ish MXU-friendly tiles, single K step when
        # possible (K <= 4608 covers every conv in VGG16).
        tm = 512
        tn = min(round_up(N, 128), 512)
        tk = min(round_up(K, 128), 4608)
    else:
        # Small-M (fc / deconv) layers: pure weight streaming, wide N tiles.
        tm = round_up(M, 8)
        tn = min(round_up(N, 128), 2048)
        tk = min(round_up(K, 128), 2048)

    Mp, Kp, Np = round_up(M, tm), round_up(K, tk), round_up(N, tn)

    a_p = jnp.pad(a.astype(jnp.bfloat16), ((0, Mp - M), (0, Kp - K)))
    b_p = jnp.pad(b.astype(jnp.bfloat16), ((0, Kp - K), (0, Np - N)))
    args = [a_p, b_p]
    has_bias = bias is not None
    if has_bias:
        bias_p = jnp.pad(bias.astype(jnp.float32).reshape(1, -1),
                         ((0, 0), (0, Np - N)))
        args.append(bias_p)

    fn = _build_matmul(Mp, Kp, Np, tm, tk, tn, has_bias, apply_relu, out_dtype)
    out = fn(*args)
    return out[:M, :N]


def _max4_kernel(a_ref, b_ref, c_ref, d_ref, o_ref):
    o_ref[...] = jnp.maximum(jnp.maximum(a_ref[...], b_ref[...]),
                             jnp.maximum(c_ref[...], d_ref[...]))


def maxpool2x2_ceil_nhwc(x):
    """nn.MaxPool2d(2, stride=2, ceil_mode=True) on an NHWC tensor."""
    N, H, W, C = x.shape
    Ho, Wo = -(-H // 2), -(-W // 2)
    xp = jnp.pad(x, ((0, 0), (0, 2 * Ho - H), (0, 2 * Wo - W), (0, 0)),
                 constant_values=-jnp.inf)
    # Four shifted 2x2-window views, reshaped to lane-dense (N*Ho, Wo*C) slabs.
    views = [xp[:, di::2, dj::2, :].reshape(N * Ho, Wo * C)
             for di in (0, 1) for dj in (0, 1)]

    rows, cols = N * Ho, Wo * C
    rt = 512 if rows >= 512 else round_up(rows, 8)
    rows_p = round_up(rows, rt)
    if rows_p != rows:
        views = [jnp.pad(v, ((0, rows_p - rows), (0, 0))) for v in views]

    out = pl.pallas_call(
        _max4_kernel,
        out_shape=jax.ShapeDtypeStruct((rows_p, cols), x.dtype),
        grid=(rows_p // rt,),
        in_specs=[pl.BlockSpec((rt, cols), lambda i: (i, 0))] * 4,
        out_specs=pl.BlockSpec((rt, cols), lambda i: (i, 0)),
        compiler_params=pltpu.CompilerParams(
            dimension_semantics=("parallel",),
            vmem_limit_bytes=48 * 1024 * 1024),
    )(*views)
    return out[:rows].reshape(N, Ho, Wo, C)


# ----------------------------------------------------------------------------
# Conv / ConvTranspose built on the Pallas matmul (NHWC internally)
# ----------------------------------------------------------------------------
def _im2col_nhwc(x, kh, kw, pad):
    """x: (N,H,W,C) -> (N*Ho*Wo, kh*kw*C); column order = (i, j, c)."""
    # TODO(synk): fuse the kh*kw taps directly into the matmul K grid axis to
    # avoid materializing the patches matrix (kept as a single concatenate).
    if pad:
        x = jnp.pad(x, ((0, 0), (pad, pad), (pad, pad), (0, 0)))
    N, Hp, Wp, C = x.shape
    Ho, Wo = Hp - kh + 1, Wp - kw + 1
    if kh == 1 and kw == 1:
        return x.reshape(N * Ho * Wo, C), Ho, Wo
    cols = [x[:, i:i + Ho, j:j + Wo, :] for i in range(kh) for j in range(kw)]
    patches = jnp.concatenate(cols, axis=-1)            # (N, Ho, Wo, kh*kw*C)
    return patches.reshape(N * Ho * Wo, kh * kw * C), Ho, Wo


def conv2d_nhwc(x, w, b, pad, relu, out_dtype=jnp.bfloat16):
    """PyTorch-style Conv2d (stride 1).  x: NHWC, w: (Cout, Cin, kh, kw)."""
    N = x.shape[0]
    Cout, Cin, kh, kw = w.shape
    patches, Ho, Wo = _im2col_nhwc(x, kh, kw, pad)
    wm = jnp.transpose(w, (2, 3, 1, 0)).reshape(kh * kw * Cin, Cout)
    out = matmul_bias_act(patches, wm, b, apply_relu=relu, out_dtype=out_dtype)
    return out.reshape(N, Ho, Wo, Cout)


def conv_transpose2d_nhwc(x, w, stride):
    """PyTorch ConvTranspose2d, no bias / no padding.  x: NHWC, w: (Cin,Cout,K,K)."""
    N, Hin, Win, Cin = x.shape
    _, Cout, K, _ = w.shape
    assert K % stride == 0
    s = stride
    Hout = (Hin - 1) * s + K
    Wout = (Win - 1) * s + K

    xm = x.reshape(N * Hin * Win, Cin)
    wm = jnp.transpose(w, (0, 2, 3, 1)).reshape(Cin, K * K * Cout)
    patches = matmul_bias_act(xm, wm, bias=None, apply_relu=False,
                              out_dtype=jnp.float32)
    patches = patches.reshape(N, Hin, Win, K, K, Cout)

    # Scatter-free col2im: split the KxK kernel into (K//s)^2 phases of s x s.
    # Within one phase, contributions from different input pixels never
    # overlap, so each phase is one dense reshape + one strided add (4 total).
    y = jnp.zeros((N, Hout, Wout, Cout), jnp.float32)
    for ph in range(K // s):
        for pw in range(K // s):
            blk = patches[:, :, :, ph * s:(ph + 1) * s, pw * s:(pw + 1) * s, :]
            blk = blk.transpose(0, 1, 3, 2, 4, 5).reshape(N, Hin * s, Win * s, Cout)
            y = y.at[:, ph * s:ph * s + Hin * s,
                     pw * s:pw * s + Win * s, :].add(blk)
    return y


# ----------------------------------------------------------------------------
# Parameter construction (deterministic, synthetic; weights stored in bf16)
# ----------------------------------------------------------------------------
def init_params(key, n_classes=21):
    params = {}
    feature_cfg = [  # (cin, cout, pad) or 'pool'
        (3, 64, 100), (64, 64, 1), 'pool',
        (64, 128, 1), (128, 128, 1), 'pool',
        (128, 256, 1), (256, 256, 1), (256, 256, 1), 'pool',
        (256, 512, 1), (512, 512, 1), (512, 512, 1), 'pool',
        (512, 512, 1), (512, 512, 1), (512, 512, 1), 'pool',
    ]

    def conv_w(key, cout, cin, kh, kw):
        fan_in = cin * kh * kw
        w = jax.random.normal(key, (cout, cin, kh, kw), jnp.bfloat16)
        w = w * math.sqrt(2.0 / fan_in)
        b = jnp.zeros((cout,), jnp.float32)
        return w, b

    feats = []
    for item in feature_cfg:
        if item == 'pool':
            feats.append('pool')
        else:
            cin, cout, pad = item
            key, sub = jax.random.split(key)
            w, b = conv_w(sub, cout, cin, 3, 3)
            feats.append((w, b, pad))
    params['features'] = feats

    key, k1, k2, k3, k4 = jax.random.split(key, 5)
    params['fc6'] = conv_w(k1, 4096, 512, 7, 7)
    params['fc7'] = conv_w(k2, 4096, 4096, 1, 1)
    params['score'] = conv_w(k3, n_classes, 4096, 1, 1)
    # ConvTranspose2d(n_classes, n_classes, 64, stride=32, bias=False)
    params['upscore_w'] = (
        jax.random.normal(k4, (n_classes, n_classes, 64, 64), jnp.bfloat16) * 0.01)
    return params


# ----------------------------------------------------------------------------
# Full forward pass (mirrors fcn32s.forward, learned_billinear=True)
# ----------------------------------------------------------------------------
def fcn32s_forward(x, params):
    H, W = x.shape[2], x.shape[3]
    h = jnp.transpose(x, (0, 2, 3, 1)).astype(jnp.bfloat16)   # NCHW -> NHWC

    # features
    for layer in params['features']:
        if layer == 'pool':
            h = maxpool2x2_ceil_nhwc(h)
        else:
            w, b, pad = layer
            h = conv2d_nhwc(h, w, b, pad, relu=True)

    # classifier (Dropout2d == identity at inference)
    w, b = params['fc6']
    h = conv2d_nhwc(h, w, b, 0, relu=True)
    w, b = params['fc7']
    h = conv2d_nhwc(h, w, b, 0, relu=True)
    w, b = params['score']
    h = conv2d_nhwc(h, w, b, 0, relu=False)

    # learned bilinear upsampling (ConvTranspose2d k=64 s=32, no bias)
    h = conv_transpose2d_nhwc(h, params['upscore_w'], stride=32)

    # crop back to input resolution, return NCHW f32
    h = h[:, 19:19 + H, 19:19 + W, :]
    return jnp.transpose(h, (0, 3, 1, 2))


if __name__ == "__main__":
    key = jax.random.PRNGKey(0)
    key, pkey, xkey = jax.random.split(key, 3)

    n_classes = 21
    params = init_params(pkey, n_classes=n_classes)

    # Small deterministic input, NCHW, 3 channels (as the first conv requires).
    x = jax.random.normal(xkey, (1, 3, 8, 8), jnp.float32)

    out = fcn32s_forward(x, params)
    out = jax.block_until_ready(out)

    assert out.shape == (1, n_classes, 8, 8), out.shape
    assert out.dtype == jnp.float32
    print("KERNEL_OK")
</pallas_src>

<mosaic_0001>
module attributes {stable_mosaic.version = 11 : i64} {
  func.func @_mm_kernel(%arg0: i32, %arg1: i32, %arg2: i32, %arg3: memref<512x128xbf16, #tpu.memory_space<vmem>>, %arg4: memref<128x128xbf16, #tpu.memory_space<vmem>>, %arg5: memref<1x128xf32, #tpu.memory_space<vmem>>, %arg6: memref<512x128xbf16, #tpu.memory_space<vmem>>, %arg7: memref<512x128xf32, #tpu.memory_space<vmem>>) attributes {dimension_semantics = [#tpu.dimension_semantics<parallel>, #tpu.dimension_semantics<parallel>, #tpu.dimension_semantics<arbitrary>], iteration_bounds = array<i64: 83, 1, 1>, scalar_prefetch = 0 : i64, scratch_operands = 1 : i64, tpu.core_type = #tpu.core_type<tc>, window_params = [{transform_indices = @transform_0, window_bounds = array<i64: 512, 128>}, {transform_indices = @transform_1, window_bounds = array<i64: 128, 128>}, {transform_indices = @transform_2, window_bounds = array<i64: 1, 128>}, {transform_indices = @transform_3, window_bounds = array<i64: 512, 128>}]} {
    %c0_i32 = arith.constant 0 : i32
    %0 = arith.cmpi eq, %arg2, %c0_i32 : i32
    %1 = arith.extui %0 : i1 to i32
    %c0_i32_0 = arith.constant 0 : i32
    %2 = arith.cmpi ne, %1, %c0_i32_0 : i32
    scf.if %2 {
      %cst_10 = arith.constant 0.000000e+00 : f32
      %12 = vector.broadcast %cst_10 : f32 to vector<512x128xf32>
      %c0_11 = arith.constant 0 : index
      %c0_12 = arith.constant 0 : index
      %13 = vector.load %arg7[%c0_11, %c0_12] : memref<512x128xf32, #tpu.memory_space<vmem>>, vector<512x128xf32>
      tpu.vector_store %arg7[%c0_11, %c0_12], %12 {strides = array<i32>} : memref<512x128xf32, #tpu.memory_space<vmem>>, vector<512x128xf32>,
    } else {
    }
    %c0 = arith.constant 0 : index
    %c0_1 = arith.constant 0 : index
    %3 = vector.load %arg7[%c0, %c0_1] : memref<512x128xf32, #tpu.memory_space<vmem>>, vector<512x128xf32>
    %c0_2 = arith.constant 0 : index
    %c0_3 = arith.constant 0 : index
    %4 = vector.load %arg3[%c0_2, %c0_3] : memref<512x128xbf16, #tpu.memory_space<vmem>>, vector<512x128xbf16>
    %c0_4 = arith.constant 0 : index
    %c0_5 = arith.constant 0 : index
    %5 = vector.load %arg4[%c0_4, %c0_5] : memref<128x128xbf16, #tpu.memory_space<vmem>>, vector<128x128xbf16>
    %cst = arith.constant dense<0.000000e+00> : vector<512x128xf32>
    %6 = tpu.matmul %4, %5, %cst {dimension_numbers = #tpu.dot_dimension_numbers<[1], [0], [0], [1], [0, 0, 1, 1], [], []>} : vector<512x128xbf16>, vector<128x128xbf16>, vector<512x128xf32> -> vector<512x128xf32>
    %7 = arith.addf %3, %6 : vector<512x128xf32>
    %c0_6 = arith.constant 0 : index
    %c0_7 = arith.constant 0 : index
    %8 = vector.load %arg7[%c0_6, %c0_7] : memref<512x128xf32, #tpu.memory_space<vmem>>, vector<512x128xf32>
    tpu.vector_store %arg7[%c0_6, %c0_7], %7 {strides = array<i32>} : memref<512x128xf32, #tpu.memory_space<vmem>>, vector<512x128xf32>,
    %c0_i32_8 = arith.constant 0 : i32
    %9 = arith.cmpi eq, %arg2, %c0_i32_8 : i32
    %10 = arith.extui %9 : i1 to i32
    %c0_i32_9 = arith.constant 0 : i32
    %11 = arith.cmpi ne, %10, %c0_i32_9 : i32
    scf.if %11 {
      %c0_10 = arith.constant 0 : index
      %c0_11 = arith.constant 0 : index
      %12 = vector.load %arg7[%c0_10, %c0_11] : memref<512x128xf32, #tpu.memory_space<vmem>>, vector<512x128xf32>
      %c0_12 = arith.constant 0 : index
      %c0_13 = arith.constant 0 : index
      %13 = vector.load %arg5[%c0_12, %c0_13] : memref<1x128xf32, #tpu.memory_space<vmem>>, vector<1x128xf32>
      %14 = vector.broadcast %13 : vector<1x128xf32> to vector<512x128xf32>
      %15 = arith.addf %12, %14 : vector<512x128xf32>
      %cst_14 = arith.constant 0.000000e+00 : f32
      %16 = vector.broadcast %cst_14 : f32 to vector<512x128xf32>
      %17 = arith.maximumf %15, %16 : vector<512x128xf32>
      %18 = arith.truncf %17 : vector<512x128xf32> to vector<512x128xbf16>
      %c0_15 = arith.constant 0 : index
      %c0_16 = arith.constant 0 : index
      %19 = vector.load %arg6[%c0_15, %c0_16] : memref<512x128xbf16, #tpu.memory_space<vmem>>, vector<512x128xbf16>
      tpu.vector_store %arg6[%c0_15, %c0_16], %18 {strides = array<i32>} : memref<512x128xbf16, #tpu.memory_space<vmem>>, vector<512x128xbf16>,
    } else {
    }
    return
  }
  func.func @transform_0(%arg0: i32, %arg1: i32, %arg2: i32) -> (i32, i32) {
    %c0_i32 = arith.constant 0 : i32
    return %arg0, %arg2 : i32, i32
  }
  func.func @transform_1(%arg0: i32, %arg1: i32, %arg2: i32) -> (i32, i32) {
    %c0_i32 = arith.constant 0 : i32
    return %arg2, %arg1 : i32, i32
  }
  func.func @transform_2(%arg0: i32, %arg1: i32, %arg2: i32) -> (i32, i32) {
    %c0_i32 = arith.constant 0 : i32
    %c0_i32_0 = arith.constant 0 : i32
    return %c0_i32, %arg1 : i32, i32
  }
  func.func @transform_3(%arg0: i32, %arg1: i32, %arg2: i32) -> (i32, i32) {
    %c0_i32 = arith.constant 0 : i32
    return %arg0, %arg1 : i32, i32
  }
}

</mosaic_0001>

<llo_original>
// kernel: tpu_custom_call.1
$region0: #{tpu_custom_call.1}
  #allocation0 [shape = 'u32[]', space=smem, size = 0x4, offset = 0x4, fixed_abs, tag = 'smem constant byte address 0x4 - core index']
  #allocation1 [shape = 'u32[144,128]{1,0:T(1,128)}', space=vmem, size = 0x12000, scoped, tag = 'internal scratch']
  #allocation2 [shape = 'f32[512,128]{1,0:T(8,128)}', space=vmem, size = 0x40000, scoped, tag = 'scratch operand']
  %s0 = inlined_call_operand.hbm [shape: bf16[42496,128], index: 0, kind: input, shape index: {}]
  %s1 = inlined_call_operand.hbm [shape: bf16[128,128], index: 1, kind: input, shape index: {}]
  %s2 = inlined_call_operand.hbm [shape: f32[1,128], index: 2, kind: input, shape index: {}]
  %s3 = inlined_call_operand.hbm [shape: bf16[42496,128], index: 3, kind: output, shape index: {}]
  %s4 = sld [smem:[#allocation0]]
  $region65: #{tpu_custom_call.1} parent=0
    _
  %s6 = ssub.s32 1, %s4
  %s7 = scalar_select 0, %s6, %s4
  $region1: #{tpu_custom_call.1} parent=0
    #allocation3 [shape = 'u8[262144]{0}', space=vmem, size = 0x40000, scoped, tag = 'input window, operand 0']
    #allocation4 [shape = 's32[2]{0}', space=sflag, size = 0x8, scoped, tag = 'scoped memory for tpu_custom_call.1']
    #allocation5 [shape = 's32[2]{0}', space=sflag, size = 0x8, scoped, tag = 'scoped memory for tpu_custom_call.1']
    #allocation6 [shape = 'u8[32768]{0}', space=vmem, size = 0x8000, scoped, tag = 'input window, operand 1, single buffered']
    #allocation7 [shape = 's32[1]{0}', space=sflag, size = 0x4, scoped, tag = 'scoped memory for tpu_custom_call.1']
    #allocation8 [shape = 'u8[512]{0}', space=vmem, size = 0x400, scoped, tag = 'input window, operand 2, single buffered']
    #allocation9 [shape = 'u8[262144]{0}', space=vmem, size = 0x40000, scoped, tag = 'output window, operand 0']
    %8 = vsyncpa [#allocation4], 0
    %s9 = scalar_lea.sflag [#allocation4], 1
    %10 = vsyncpa %s9, 0
    %11 = vsyncpa [#allocation7], 0
    %12 = vsyncpa [#allocation5], 0
    %s13 = scalar_lea.sflag [#allocation5], 1
    %14 = vsyncpa %s13, 0
    loop: start=0, step=1, limit=85
    $region2: #{tpu_custom_call.1} parent=1 // loop_pre_header
      _
    $region3: #{tpu_custom_call.1} parent=1 // loop_header
      %s16 = sphi 0, %s20
      %p17 = scmp.ge.s32.totalorder %s16, 85
      %s23 = sphi 0, %s42
      %s24 = sphi 0, %s38
      %s25 = sphi 0, %s34
      %s26 = sphi 0, %s23
      %s27 = sphi 0, %s24
      %s28 = sphi 0, %s25
      %s29 = sphi 0, %s26
      %s30 = sphi 0, %s27
      %s31 = sphi 0, %s28
      %s47 = sphi 0, %s49
      %s50 = sphi 0, %s47
      %s51 = sphi 0, %s50
      %s67 = sphi 0, %s51
      %s75 = sphi 0, %s77
      %s78 = sphi 0, %s75
      %s79 = sphi 0, %s78
      %s95 = sphi 0, %s79
      %s101 = sphi 0, %s103
      %s104 = sphi 0, %s101
      %s105 = sphi 0, %s104
      %s121 = sphi 0, %s105
      %s129 = sphi 0, %s131
      %s132 = sphi 0, %s129
      %s133 = sphi 0, %s132
      %s149 = sphi 0, %s133
    $region4: #{tpu_custom_call.1} parent=1 // loop_header_branch
      %19 = sbr.rel (%p17) target = $region8
    $region5: #{tpu_custom_call.1} parent=1 // loop_body
      %s21 = ssub.s32 %s16, 1
      %s22 = ssub.s32 %s16, 2
      %s32 = sadd.s32 1, %s25
      %p33 = scmp.ge.s32.totalorder %s32, 1
      %s34 = scalar_select %p33, 0, %s32
      %s35 = sadd.s32 1, %s24
      %s36 = scalar_select %p33, %s35, %s24
      %p37 = scmp.ge.s32.totalorder %s36, 1
      %s38 = scalar_select %p37, 0, %s36
      %s39 = sadd.s32 1, %s23
      %s40 = scalar_select %p37, %s39, %s23
      %p41 = scmp.ge.s32.totalorder %s40, 83
      %s42 = scalar_select %p41, 0, %s40
      %s43 = ssub.s32 %s23, %s42
      %s44 = ssub.s32 %s25, %s34
      %s45 = sor.u32 %s43, %s44
      %p46 = scmp.eq.s32.totalorder %s45, 0
      %s48 = sadd.s32 %s47, 1
      %s49 = scalar_select %p46, %s47, %s48
      %p52 = pneg %p46
      %p53 = scmp.eq.s32.totalorder %s16, 82
      %p54 = por %p52, %p53
      %p55 = scmp.ne.s32.totalorder %s47, %s50
      %p56 = scmp.eq.s32.totalorder %s16, 0
      %p57 = por %p55, %p56
      %p58 = scmp.ne.s32.totalorder %s47, %s50
      %p59 = scmp.eq.s32.totalorder %s21, 82
      %p60 = por %p58, %p59
      %p61 = scmp.ne.s32.totalorder %s50, %s51
      %p62 = scmp.eq.s32.totalorder %s21, 0
      %p63 = por %p61, %p62
      %p64 = scmp.ne.s32.totalorder %s50, %s51
      %p65 = scmp.eq.s32.totalorder %s22, 82
      %p66 = por %p64, %p65
      %p68 = scmp.ne.s32.totalorder %s51, %s67
      %p69 = scmp.eq.s32.totalorder %s22, 0
      %p70 = por %p68, %p69
      %s71 = ssub.s32 %s25, %s34
      %s72 = ssub.s32 %s24, %s38
      %s73 = sor.u32 %s71, %s72
      %p74 = scmp.eq.s32.totalorder %s73, 0
      %s76 = sadd.s32 %s75, 1
      %s77 = scalar_select %p74, %s75, %s76
      %p80 = pneg %p74
      %p81 = scmp.eq.s32.totalorder %s16, 82
      %p82 = por %p80, %p81
      %p83 = scmp.ne.s32.totalorder %s75, %s78
      %p84 = scmp.eq.s32.totalorder %s16, 0
      %p85 = por %p83, %p84
      %p86 = scmp.ne.s32.totalorder %s75, %s78
      %p87 = scmp.eq.s32.totalorder %s21, 82
      %p88 = por %p86, %p87
      %p89 = scmp.ne.s32.totalorder %s78, %s79
      %p90 = scmp.eq.s32.totalorder %s21, 0
      %p91 = por %p89, %p90
      %p92 = scmp.ne.s32.totalorder %s78, %s79
      %p93 = scmp.eq.s32.totalorder %s22, 82
      %p94 = por %p92, %p93
      %p96 = scmp.ne.s32.totalorder %s79, %s95
      %p97 = scmp.eq.s32.totalorder %s22, 0
      %p98 = por %p96, %p97
      %s99 = ssub.s32 %s24, %s38
      %p100 = scmp.eq.s32.totalorder %s99, 0
      %s102 = sadd.s32 %s101, 1
      %s103 = scalar_select %p100, %s101, %s102
      %p106 = pneg %p100
      %p107 = scmp.eq.s32.totalorder %s16, 82
      %p108 = por %p106, %p107
      %p109 = scmp.ne.s32.totalorder %s101, %s104
      %p110 = scmp.eq.s32.totalorder %s16, 0
      %p111 = por %p109, %p110
      %p112 = scmp.ne.s32.totalorder %s101, %s104
      %p113 = scmp.eq.s32.totalorder %s21, 82
      %p114 = por %p112, %p113
      %p115 = scmp.ne.s32.totalorder %s104, %s105
      %p116 = scmp.eq.s32.totalorder %s21, 0
      %p117 = por %p115, %p116
      %p118 = scmp.ne.s32.totalorder %s104, %s105
      %p119 = scmp.eq.s32.totalorder %s22, 82
      %p120 = por %p118, %p119
      %p122 = scmp.ne.s32.totalorder %s105, %s121
      %p123 = scmp.eq.s32.totalorder %s22, 0
      %p124 = por %p122, %p123
      %s125 = ssub.s32 %s23, %s42
      %s126 = ssub.s32 %s24, %s38
      %s127 = sor.u32 %s125, %s126
      %p128 = scmp.eq.s32.totalorder %s127, 0
      %s130 = sadd.s32 %s129, 1
      %s131 = scalar_select %p128, %s129, %s130
      %p134 = pneg %p128
      %p135 = scmp.eq.s32.totalorder %s16, 82
      %p136 = por %p134, %p135
      %p137 = scmp.ne.s32.totalorder %s129, %s132
      %p138 = scmp.eq.s32.totalorder %s16, 0
      %p139 = por %p137, %p138
      %p140 = scmp.ne.s32.totalorder %s129, %s132
      %p141 = scmp.eq.s32.totalorder %s21, 82
      %p142 = por %p140, %p141
      %p143 = scmp.ne.s32.totalorder %s132, %s133
      %p144 = scmp.eq.s32.totalorder %s21, 0
      %p145 = por %p143, %p144
      %p146 = scmp.ne.s32.totalorder %s132, %s133
      %p147 = scmp.eq.s32.totalorder %s22, 82
      %p148 = por %p146, %p147
      %p150 = scmp.ne.s32.totalorder %s133, %s149
      %p151 = scmp.eq.s32.totalorder %s22, 0
      %p152 = por %p150, %p151
      %p153 = scmp.le.s32.totalorder 1, %s16
      %p154 = scmp.lt.s32.totalorder %s16, 84
      %p155 = pnand %p153, %p154
      %p156 = pneg %p155
      // Predicated region
      $region9: #{tpu_custom_call.1} parent=5 // pred_check
        _
      $region10: #{tpu_custom_call.1} parent=5 // pred_check_branch
        %158 = sbr.rel (%p155) target = $region12
      $region11: #{tpu_custom_call.1} parent=5 // pred_region
        %s159 = ssub.s32 %s16, 1
        // Predicated region
        $region13: #{tpu_custom_call.1} parent=11 // pred_check
          %p160 = pneg %p91
        $region14: #{tpu_custom_call.1} parent=11 // pred_check_branch
          %162 = sbr.rel (%p160) target = $region16
        $region15: #{tpu_custom_call.1} parent=11 // pred_region
          %s163 = smul.u32 16, %s28
          %s165 = ssub.s32 1024, 1024
          %166 = vsyncadd [#allocation7], %s165
          %s167 = sadd.s32 %s27, %s163
          %s168 = smul.addr %s167, 64
          %s169 = scalar_lea.hbm %s1, %s168
          %s170 = sshll.u32 [#allocation6], 4
          %s171 = int_to_ptr.vmem [resolvable:$true] %s170
          %176 = dma.hbm_to_vmem [thread:$0]  %s169, 1024, %s171, [#allocation7], 64, 64, 4
        $region16: #{tpu_custom_call.1} parent=11 // pred_fallthru
          _
        // Predicated region
        $region17: #{tpu_custom_call.1} parent=11 // pred_check
          %p177 = pneg %p117
        $region18: #{tpu_custom_call.1} parent=11 // pred_check_branch
          %179 = sbr.rel (%p177) target = $region20
        $region19: #{tpu_custom_call.1} parent=11 // pred_region
          %s181 = ssub.s32 16, 16
          %182 = vsyncadd [#allocation7], %s181
          %s183 = smul.addr %s27, 16
          %s184 = scalar_lea.hbm %s2, %s183
          %s186 = sshll.u32 [#allocation8], 4
          %s187 = int_to_ptr.vmem [resolvable:$true] %s186
          %189 = dma.hbm_to_vmem [thread:$0]  %s184, 16, %s187, [#allocation7]
        $region20: #{tpu_custom_call.1} parent=11 // pred_fallthru
          _
      $region12: #{tpu_custom_call.1} parent=5 // pred_fallthru
        _
      %p190 = scmp.lt.s32.totalorder %s16, 83
      // Predicated region
      $region21: #{tpu_custom_call.1} parent=5 // pred_check
        %p191 = pneg %p190
      $region22: #{tpu_custom_call.1} parent=5 // pred_check_branch
        %193 = sbr.rel (%p191) target = $region24
      $region23: #{tpu_custom_call.1} parent=5 // pred_region
        // Predicated region
        $region25: #{tpu_custom_call.1} parent=23 // pred_check
          %p194 = pneg %p57
        $region26: #{tpu_custom_call.1} parent=23 // pred_check_branch
          %196 = sbr.rel (%p194) target = $region28
        $region27: #{tpu_custom_call.1} parent=23 // pred_region
          %s197 = sand.u32 %s47, 1
          %s198 = scalar_lea.sflag [#allocation4], %s197
          %s199 = sand.u32 %s47, 1
          %s200 = smul.addr %s199, 256
          %s201 = scalar_lea.vmem [#allocation3], %s200
          %s202 = smul.u32 64, %s23
          %s204 = ssub.s32 4096, 4096
          %205 = vsyncadd %s198, %s204
          %s206 = sadd.s32 %s25, %s202
          %s207 = smul.addr %s206, 64
          %s208 = scalar_lea.hbm %s0, %s207
          %s209 = sshll.u32 %s201, 4
          %s210 = int_to_ptr.vmem [resolvable:$true] %s209
          %215 = dma.hbm_to_vmem [thread:$0]  %s208, 4096, %s210, %s198, 64, 64, 4
        $region28: #{tpu_custom_call.1} parent=23 // pred_fallthru
          _
      $region24: #{tpu_custom_call.1} parent=5 // pred_fallthru
        _
      %p216 = scmp.le.s32.totalorder 1, %s16
      %p217 = scmp.lt.s32.totalorder %s16, 84
      %p218 = pnand %p216, %p217
      %p219 = pneg %p218
      // Predicated region
      $region29: #{tpu_custom_call.1} parent=5 // pred_check
        _
      $region30: #{tpu_custom_call.1} parent=5 // pred_check_branch
        %221 = sbr.rel (%p218) target = $region32
      $region31: #{tpu_custom_call.1} parent=5 // pred_region
        %s222 = ssub.s32 %s16, 1
        %s223 = sand.u32 %s50, 1
        %s224 = scalar_lea.sflag [#allocation4], %s223
        %s225 = sand.u32 %s50, 1
        %s226 = smul.addr %s225, 256
        %s227 = scalar_lea.vmem [#allocation3], %s226
        // Predicated region
        $region33: #{tpu_custom_call.1} parent=31 // pred_check
          %p228 = pneg %p63
        $region34: #{tpu_custom_call.1} parent=31 // pred_check_branch
          %230 = sbr.rel (%p228) target = $region36
        $region35: #{tpu_custom_call.1} parent=31 // pred_region
          %231 = dma.done %s224, 4096
        $region36: #{tpu_custom_call.1} parent=31 // pred_fallthru
          _
        // Predicated region
        $region37: #{tpu_custom_call.1} parent=31 // pred_check
          %p232 = pneg %p91
        $region38: #{tpu_custom_call.1} parent=31 // pred_check_branch
          %234 = sbr.rel (%p232) target = $region40
        $region39: #{tpu_custom_call.1} parent=31 // pred_region
          %235 = dma.done [#allocation7], 1024
        $region40: #{tpu_custom_call.1} parent=31 // pred_fallthru
          _
        // Predicated region
        $region41: #{tpu_custom_call.1} parent=31 // pred_check
          %p236 = pneg %p117
        $region42: #{tpu_custom_call.1} parent=31 // pred_check_branch
          %238 = sbr.rel (%p236) target = $region44
        $region43: #{tpu_custom_call.1} parent=31 // pred_region
          %239 = dma.done [#allocation7], 16
        $region44: #{tpu_custom_call.1} parent=31 // pred_fallthru
          _
        %s240 = sand.u32 %s50, 1
        %s241 = scalar_lea.sflag [#allocation4], %s240
        %s242 = sand.u32 %s50, 1
        %s243 = smul.addr %s242, 256
        %s244 = scalar_lea.vmem [#allocation3], %s243
        %p245 = pneg %p63
        %p246 = pneg %p60
        %p247 = pneg %p91
        %p248 = pneg %p88
        %p249 = pneg %p117
        %p250 = pneg %p114
        %p251 = pneg %p145
        %p252 = pneg %p142
        %s253 = sand.u32 %s132, 1
        %s254 = scalar_lea.sflag [#allocation5], %s253
        %s255 = sand.u32 %s132, 1
        %s256 = smul.addr %s255, 256
        %s257 = scalar_lea.vmem [#allocation9], %s256
        %s258 = smul.u32 64, %s26
        %s259 = smul.u32 16, %s28
        %s260 = smul.u32 64, %s26
        %p262 = scmp.eq.s32.totalorder %s28, 0
        // Predicated region
        $region45: #{tpu_custom_call.1} parent=31 // pred_check
          %p263 = pneg %p262
        $region46: #{tpu_custom_call.1} parent=31 // pred_check_branch
          %265 = sbr.rel (%p263) target = $region48
        $region47: #{tpu_custom_call.1} parent=31 // pred_region
          %266 = vst [vmem:[#allocation2] sm:$0xff] 0.0
          %267 = vst [vmem:[#allocation2 + $0x8] sm:$0xff] 0.0
          %268 = vst [vmem:[#allocation2 + $0x10] sm:$0xff] 0.0
          %269 = vst [vmem:[#allocation2 + $0x18] sm:$0xff] 0.0
          %270 = vst [vmem:[#allocation2 + $0x20] sm:$0xff] 0.0
          %271 = vst [vmem:[#allocation2 + $0x28] sm:$0xff] 0.0
          %272 = vst [vmem:[#allocation2 + $0x30] sm:$0xff] 0.0
          %273 = vst [vmem:[#allocation2 + $0x38] sm:$0xff] 0.0
          %274 = vst [vmem:[#allocation2 + $0x40] sm:$0xff] 0.0
          %275 = vst [vmem:[#allocation2 + $0x48] sm:$0xff] 0.0
          %276 = vst [vmem:[#allocation2 + $0x50] sm:$0xff] 0.0
          %277 = vst [vmem:[#allocation2 + $0x58] sm:$0xff] 0.0
          %278 = vst [vmem:[#allocation2 + $0x60] sm:$0xff] 0.0
          %279 = vst [vmem:[#allocation2 + $0x68] sm:$0xff] 0.0
          %280 = vst [vmem:[#allocation2 + $0x70] sm:$0xff] 0.0
          %281 = vst [vmem:[#allocation2 + $0x78] sm:$0xff] 0.0
          %282 = vst [vmem:[#allocation2 + $0x80] sm:$0xff] 0.0
          %283 = vst [vmem:[#allocation2 + $0x88] sm:$0xff] 0.0
          %284 = vst [vmem:[#allocation2 + $0x90] sm:$0xff] 0.0
          %285 = vst [vmem:[#allocation2 + $0x98] sm:$0xff] 0.0
          %286 = vst [vmem:[#allocation2 + $0xa0] sm:$0xff] 0.0
          %287 = vst [vmem:[#allocation2 + $0xa8] sm:$0xff] 0.0
          %288 = vst [vmem:[#allocation2 + $0xb0] sm:$0xff] 0.0
          %289 = vst [vmem:[#allocation2 + $0xb8] sm:$0xff] 0.0
          %290 = vst [vmem:[#allocation2 + $0xc0] sm:$0xff] 0.0
          %291 = vst [vmem:[#allocation2 + $0xc8] sm:$0xff] 0.0
          %292 = vst [vmem:[#allocation2 + $0xd0] sm:$0xff] 0.0
          %293 = vst [vmem:[#allocation2 + $0xd8] sm:$0xff] 0.0
          %294 = vst [vmem:[#allocation2 + $0xe0] sm:$0xff] 0.0
          %295 = vst [vmem:[#allocation2 + $0xe8] sm:$0xff] 0.0
          %296 = vst [vmem:[#allocation2 + $0xf0] sm:$0xff] 0.0
          %297 = vst [vmem:[#allocation2 + $0xf8] sm:$0xff] 0.0
          %298 = vst [vmem:[#allocation2 + $0x100] sm:$0xff] 0.0
          %299 = vst [vmem:[#allocation2 + $0x108] sm:$0xff] 0.0
          %300 = vst [vmem:[#allocation2 + $0x110] sm:$0xff] 0.0
          %301 = vst [vmem:[#allocation2 + $0x118] sm:$0xff] 0.0
          %302 = vst [vmem:[#allocation2 + $0x120] sm:$0xff] 0.0
          %303 = vst [vmem:[#allocation2 + $0x128] sm:$0xff] 0.0
          %304 = vst [vmem:[#allocation2 + $0x130] sm:$0xff] 0.0
          %305 = vst [vmem:[#allocation2 + $0x138] sm:$0xff] 0.0
          %306 = vst [vmem:[#allocation2 + $0x140] sm:$0xff] 0.0
          %307 = vst [vmem:[#allocation2 + $0x148] sm:$0xff] 0.0
          %308 = vst [vmem:[#allocation2 + $0x150] sm:$0xff] 0.0
          %309 = vst [vmem:[#allocation2 + $0x158] sm:$0xff] 0.0
          %310 = vst [vmem:[#allocation2 + $0x160] sm:$0xff] 0.0
          %311 = vst [vmem:[#allocation2 + $0x168] sm:$0xff] 0.0
          %312 = vst [vmem:[#allocation2 + $0x170] sm:$0xff] 0.0
          %313 = vst [vmem:[#allocation2 + $0x178] sm:$0xff] 0.0
          %314 = vst [vmem:[#allocation2 + $0x180] sm:$0xff] 0.0
          %315 = vst [vmem:[#allocation2 + $0x188] sm:$0xff] 0.0
          %316 = vst [vmem:[#allocation2 + $0x190] sm:$0xff] 0.0
          %317 = vst [vmem:[#allocation2 + $0x198] sm:$0xff] 0.0
          %318 = vst [vmem:[#allocation2 + $0x1a0] sm:$0xff] 0.0
          %319 = vst [vmem:[#allocation2 + $0x1a8] sm:$0xff] 0.0
          %320 = vst [vmem:[#allocation2 + $0x1b0] sm:$0xff] 0.0
          %321 = vst [vmem:[#allocation2 + $0x1b8] sm:$0xff] 0.0
          %322 = vst [vmem:[#allocation2 + $0x1c0] sm:$0xff] 0.0
          %323 = vst [vmem:[#allocation2 + $0x1c8] sm:$0xff] 0.0
          %324 = vst [vmem:[#allocation2 + $0x1d0] sm:$0xff] 0.0
          %325 = vst [vmem:[#allocation2 + $0x1d8] sm:$0xff] 0.0
          %326 = vst [vmem:[#allocation2 + $0x1e0] sm:$0xff] 0.0
          %327 = vst [vmem:[#allocation2 + $0x1e8] sm:$0xff] 0.0
          %328 = vst [vmem:[#allocation2 + $0x1f0] sm:$0xff] 0.0
          %329 = vst [vmem:[#allocation2 + $0x1f8] sm:$0xff] 0.0
        $region48: #{tpu_custom_call.1} parent=31 // pred_fallthru
          _
        %v330 = vld [vmem:[#allocation2] sm:$0xff]
        %v331 = vld [vmem:[#allocation2 + $0x8] sm:$0xff]
        %v332 = vld [vmem:[#allocation2 + $0x10] sm:$0xff]
        %v333 = vld [vmem:[#allocation2 + $0x18] sm:$0xff]
        %v334 = vld [vmem:[#allocation2 + $0x20] sm:$0xff]
        %v335 = vld [vmem:[#allocation2 + $0x28] sm:$0xff]
        %v336 = vld [vmem:[#allocation2 + $0x30] sm:$0xff]
        %v337 = vld [vmem:[#allocation2 + $0x38] sm:$0xff]
        %v338 = vld [vmem:[#allocation2 + $0x40] sm:$0xff]
        %v339 = vld [vmem:[#allocation2 + $0x48] sm:$0xff]
        %v340 = vld [vmem:[#allocation2 + $0x50] sm:$0xff]
        %v341 = vld [vmem:[#allocation2 + $0x58] sm:$0xff]
        %v342 = vld [vmem:[#allocation2 + $0x60] sm:$0xff]
        %v343 = vld [vmem:[#allocation2 + $0x68] sm:$0xff]
        %v344 = vld [vmem:[#allocation2 + $0x70] sm:$0xff]
        %v345 = vld [vmem:[#allocation2 + $0x78] sm:$0xff]
        %v346 = vld [vmem:[#allocation2 + $0x80] sm:$0xff]
        %v347 = vld [vmem:[#allocation2 + $0x88] sm:$0xff]
        %v348 = vld [vmem:[#allocation2 + $0x90] sm:$0xff]
        %v349 = vld [vmem:[#allocation2 + $0x98] sm:$0xff]
        %v350 = vld [vmem:[#allocation2 + $0xa0] sm:$0xff]
        %v351 = vld [vmem:[#allocation2 + $0xa8] sm:$0xff]
        %v352 = vld [vmem:[#allocation2 + $0xb0] sm:$0xff]
        %v353 = vld [vmem:[#allocation2 + $0xb8] sm:$0xff]
        %v354 = vld [vmem:[#allocation2 + $0xc0] sm:$0xff]
        %v355 = vld [vmem:[#allocation2 + $0xc8] sm:$0xff]
        %v356 = vld [vmem:[#allocation2 + $0xd0] sm:$0xff]
        %v357 = vld [vmem:[#allocation2 + $0xd8] sm:$0xff]
        %v358 = vld [vmem:[#allocation2 + $0xe0] sm:$0xff]
        %v359 = vld [vmem:[#allocation2 + $0xe8] sm:$0xff]
        %v360 = vld [vmem:[#allocation2 + $0xf0] sm:$0xff]
        %v361 = vld [vmem:[#allocation2 + $0xf8] sm:$0xff]
        %v362 = vld [vmem:[#allocation2 + $0x100] sm:$0xff]
        %v363 = vld [vmem:[#allocation2 + $0x108] sm:$0xff]
        %v364 = vld [vmem:[#allocation2 + $0x110] sm:$0xff]
        %v365 = vld [vmem:[#allocation2 + $0x118] sm:$0xff]
        %v366 = vld [vmem:[#allocation2 + $0x120] sm:$0xff]
        %v367 = vld [vmem:[#allocation2 + $0x128] sm:$0xff]
        %v368 = vld [vmem:[#allocation2 + $0x130] sm:$0xff]
        %v369 = vld [vmem:[#allocation2 + $0x138] sm:$0xff]
        %v370 = vld [vmem:[#allocation2 + $0x140] sm:$0xff]
        %v371 = vld [vmem:[#allocation2 + $0x148] sm:$0xff]
        %v372 = vld [vmem:[#allocation2 + $0x150] sm:$0xff]
        %v373 = vld [vmem:[#allocation2 + $0x158] sm:$0xff]
        %v374 = vld [vmem:[#allocation2 + $0x160] sm:$0xff]
        %v375 = vld [vmem:[#allocation2 + $0x168] sm:$0xff]
        %v376 = vld [vmem:[#allocation2 + $0x170] sm:$0xff]
        %v377 = vld [vmem:[#allocation2 + $0x178] sm:$0xff]
        %v378 = vld [vmem:[#allocation2 + $0x180] sm:$0xff]
        %v379 = vld [vmem:[#allocation2 + $0x188] sm:$0xff]
        %v380 = vld [vmem:[#allocation2 + $0x190] sm:$0xff]
        %v381 = vld [vmem:[#allocation2 + $0x198] sm:$0xff]
        %v382 = vld [vmem:[#allocation2 + $0x1a0] sm:$0xff]
        %v383 = vld [vmem:[#allocation2 + $0x1a8] sm:$0xff]
        %v384 = vld [vmem:[#allocation2 + $0x1b0] sm:$0xff]
        %v385 = vld [vmem:[#allocation2 + $0x1b8] sm:$0xff]
        %v386 = vld [vmem:[#allocation2 + $0x1c0] sm:$0xff]
        %v387 = vld [vmem:[#allocation2 + $0x1c8] sm:$0xff]
        %v388 = vld [vmem:[#allocation2 + $0x1d0] sm:$0xff]
        %v389 = vld [vmem:[#allocation2 + $0x1d8] sm:$0xff]
        %v390 = vld [vmem:[#allocation2 + $0x1e0] sm:$0xff]
        %v391 = vld [vmem:[#allocation2 + $0x1e8] sm:$0xff]
        %v392 = vld [vmem:[#allocation2 + $0x1f0] sm:$0xff]
        %v393 = vld [vmem:[#allocation2 + $0x1f8] sm:$0xff]
        %v394 = vld [vmem:[%s227] sm:$0xf]
        %v395 = vld [vmem:[%s227 + $0x4] sm:$0xf]
        %v396 = vld [vmem:[%s227 + $0x8] sm:$0xf]
        %v397 = vld [vmem:[%s227 + $0xc] sm:$0xf]
        %v398 = vld [vmem:[%s227 + $0x10] sm:$0xf]
        %v399 = vld [vmem:[%s227 + $0x14] sm:$0xf]
        %v400 = vld [vmem:[%s227 + $0x18] sm:$0xf]
        %v401 = vld [vmem:[%s227 + $0x1c] sm:$0xf]
        %v402 = vld [vmem:[%s227 + $0x20] sm:$0xf]
        %v403 = vld [vmem:[%s227 + $0x24] sm:$0xf]
        %v404 = vld [vmem:[%s227 + $0x28] sm:$0xf]
        %v405 = vld [vmem:[%s227 + $0x2c] sm:$0xf]
        %v406 = vld [vmem:[%s227 + $0x30] sm:$0xf]
        %v407 = vld [vmem:[%s227 + $0x34] sm:$0xf]
        %v408 = vld [vmem:[%s227 + $0x38] sm:$0xf]
        %v409 = vld [vmem:[%s227 + $0x3c] sm:$0xf]
        %v410 = vld [vmem:[%s227 + $0x40] sm:$0xf]
        %v411 = vld [vmem:[%s227 + $0x44] sm:$0xf]
        %v412 = vld [vmem:[%s227 + $0x48] sm:$0xf]
        %v413 = vld [vmem:[%s227 + $0x4c] sm:$0xf]
        %v414 = vld [vmem:[%s227 + $0x50] sm:$0xf]
        %v415 = vld [vmem:[%s227 + $0x54] sm:$0xf]
        %v416 = vld [vmem:[%s227 + $0x58] sm:$0xf]
        %v417 = vld [vmem:[%s227 + $0x5c] sm:$0xf]
        %v418 = vld [vmem:[%s227 + $0x60] sm:$0xf]
        %v419 = vld [vmem:[%s227 + $0x64] sm:$0xf]
        %v420 = vld [vmem:[%s227 + $0x68] sm:$0xf]
        %v421 = vld [vmem:[%s227 + $0x6c] sm:$0xf]
        %v422 = vld [vmem:[%s227 + $0x70] sm:$0xf]
        %v423 = vld [vmem:[%s227 + $0x74] sm:$0xf]
        %v424 = vld [vmem:[%s227 + $0x78] sm:$0xf]
        %v425 = vld [vmem:[%s227 + $0x7c] sm:$0xf]
        %v426 = vld [vmem:[%s227 + $0x80] sm:$0xf]
        %v427 = vld [vmem:[%s227 + $0x84] sm:$0xf]
        %v428 = vld [vmem:[%s227 + $0x88] sm:$0xf]
        %v429 = vld [vmem:[%s227 + $0x8c] sm:$0xf]
        %v430 = vld [vmem:[%s227 + $0x90] sm:$0xf]
        %v431 = vld [vmem:[%s227 + $0x94] sm:$0xf]
        %v432 = vld [vmem:[%s227 + $0x98] sm:$0xf]
        %v433 = vld [vmem:[%s227 + $0x9c] sm:$0xf]
        %v434 = vld [vmem:[%s227 + $0xa0] sm:$0xf]
        %v435 = vld [vmem:[%s227 + $0xa4] sm:$0xf]
        %v436 = vld [vmem:[%s227 + $0xa8] sm:$0xf]
        %v437 = vld [vmem:[%s227 + $0xac] sm:$0xf]
        %v438 = vld [vmem:[%s227 + $0xb0] sm:$0xf]
        %v439 = vld [vmem:[%s227 + $0xb4] sm:$0xf]
        %v440 = vld [vmem:[%s227 + $0xb8] sm:$0xf]
        %v441 = vld [vmem:[%s227 + $0xbc] sm:$0xf]
        %v442 = vld [vmem:[%s227 + $0xc0] sm:$0xf]
        %v443 = vld [vmem:[%s227 + $0xc4] sm:$0xf]
        %v444 = vld [vmem:[%s227 + $0xc8] sm:$0xf]
        %v445 = vld [vmem:[%s227 + $0xcc] sm:$0xf]
        %v446 = vld [vmem:[%s227 + $0xd0] sm:$0xf]
        %v447 = vld [vmem:[%s227 + $0xd4] sm:$0xf]
        %v448 = vld [vmem:[%s227 + $0xd8] sm:$0xf]
        %v449 = vld [vmem:[%s227 + $0xdc] sm:$0xf]
        %v450 = vld [vmem:[%s227 + $0xe0] sm:$0xf]
        %v451 = vld [vmem:[%s227 + $0xe4] sm:$0xf]
        %v452 = vld [vmem:[%s227 + $0xe8] sm:$0xf]
        %v453 = vld [vmem:[%s227 + $0xec] sm:$0xf]
        %v454 = vld [vmem:[%s227 + $0xf0] sm:$0xf]
        %v455 = vld [vmem:[%s227 + $0xf4] sm:$0xf]
        %v456 = vld [vmem:[%s227 + $0xf8] sm:$0xf]
        %v457 = vld [vmem:[%s227 + $0xfc] sm:$0xf]
        %v458 = vld [vmem:[#allocation6] sm:$0xf]
        %v459 = vld [vmem:[#allocation6 + $0x4] sm:$0xf]
        %v460 = vld [vmem:[#allocation6 + $0x8] sm:$0xf]
        %v461 = vld [vmem:[#allocation6 + $0xc] sm:$0xf]
        %v462 = vld [vmem:[#allocation6 + $0x10] sm:$0xf]
        %v463 = vld [vmem:[#allocation6 + $0x14] sm:$0xf]
        %v464 = vld [vmem:[#allocation6 + $0x18] sm:$0xf]
        %v465 = vld [vmem:[#allocation6 + $0x1c] sm:$0xf]
        %v466 = vld [vmem:[#allocation6 + $0x20] sm:$0xf]
        %v467 = vld [vmem:[#allocation6 + $0x24] sm:$0xf]
        %v468 = vld [vmem:[#allocation6 + $0x28] sm:$0xf]
        %v469 = vld [vmem:[#allocation6 + $0x2c] sm:$0xf]
        %v470 = vld [vmem:[#allocation6 + $0x30] sm:$0xf]
        %v471 = vld [vmem:[#allocation6 + $0x34] sm:$0xf]
        %v472 = vld [vmem:[#allocation6 + $0x38] sm:$0xf]
        %v473 = vld [vmem:[#allocation6 + $0x3c] sm:$0xf]
        %v538 = vunpack.c.l.b16 %v394
        %v539 = vunpack.c.l.b16 %v395
        %v540 = vunpack.c.l.b16 %v396
        %v541 = vunpack.c.l.b16 %v397
        %v542 = vunpack.c.l.b16 %v398
        %v543 = vunpack.c.l.b16 %v399
        %v544 = vunpack.c.l.b16 %v400
        %v545 = vunpack.c.l.b16 %v401
        %v546 = vunpack.c.l.b16 %v402
        %v547 = vunpack.c.l.b16 %v403
        %v548 = vunpack.c.l.b16 %v404
        %v549 = vunpack.c.l.b16 %v405
        %v550 = vunpack.c.l.b16 %v406
        %v551 = vunpack.c.l.b16 %v407
        %v552 = vunpack.c.l.b16 %v408
        %v553 = vunpack.c.l.b16 %v409
        %v554 = vunpack.c.l.b16 %v410
        %v555 = vunpack.c.l.b16 %v411
        %v556 = vunpack.c.l.b16 %v412
        %v557 = vunpack.c.l.b16 %v413
        %v558 = vunpack.c.l.b16 %v414
        %v559 = vunpack.c.l.b16 %v415
        %v560 = vunpack.c.l.b16 %v416
        %v561 = vunpack.c.l.b16 %v417
        %v562 = vunpack.c.l.b16 %v418
        %v563 = vunpack.c.l.b16 %v419
        %v564 = vunpack.c.l.b16 %v420
        %v565 = vunpack.c.l.b16 %v421
        %v566 = vunpack.c.l.b16 %v422
        %v567 = vunpack.c.l.b16 %v423
        %v568 = vunpack.c.l.b16 %v424
        %v569 = vunpack.c.l.b16 %v425
        %v570 = vunpack.c.l.b16 %v426
        %v571 = vunpack.c.l.b16 %v427
        %v572 = vunpack.c.l.b16 %v428
        %v573 = vunpack.c.l.b16 %v429
        %v574 = vunpack.c.l.b16 %v430
        %v575 = vunpack.c.l.b16 %v431
        %v576 = vunpack.c.l.b16 %v432
        %v577 = vunpack.c.l.b16 %v433
        %v578 = vunpack.c.l.b16 %v434
        %v579 = vunpack.c.l.b16 %v435
        %v580 = vunpack.c.l.b16 %v436
        %v581 = vunpack.c.l.b16 %v437
        %v582 = vunpack.c.l.b16 %v438
        %v583 = vunpack.c.l.b16 %v439
        %v584 = vunpack.c.l.b16 %v440
        %v585 = vunpack.c.l.b16 %v441
        %v586 = vunpack.c.l.b16 %v442
        %v587 = vunpack.c.l.b16 %v443
        %v588 = vunpack.c.l.b16 %v444
        %v589 = vunpack.c.l.b16 %v445
        %v590 = vunpack.c.l.b16 %v446
        %v591 = vunpack.c.l.b16 %v447
        %v592 = vunpack.c.l.b16 %v448
        %v593 = vunpack.c.l.b16 %v449
        %v594 = vunpack.c.l.b16 %v450
        %v595 = vunpack.c.l.b16 %v451
        %v596 = vunpack.c.l.b16 %v452
        %v597 = vunpack.c.l.b16 %v453
        %v598 = vunpack.c.l.b16 %v454
        %v599 = vunpack.c.l.b16 %v455
        %v600 = vunpack.c.l.b16 %v456
        %v601 = vunpack.c.l.b16 %v457
        %v602 = vpack.c.b16 %v539, %v538
        %v603 = vpack.c.b16 %v541, %v540
        %v604 = vpack.c.b16 %v543, %v542
        %v605 = vpack.c.b16 %v545, %v544
        %v606 = vpack.c.b16 %v547, %v546
        %v607 = vpack.c.b16 %v549, %v548
        %v608 = vpack.c.b16 %v551, %v550
        %v609 = vpack.c.b16 %v553, %v552
        %v610 = vpack.c.b16 %v555, %v554
        %v611 = vpack.c.b16 %v557, %v556
        %v612 = vpack.c.b16 %v559, %v558
        %v613 = vpack.c.b16 %v561, %v560
        %v614 = vpack.c.b16 %v563, %v562
        %v615 = vpack.c.b16 %v565, %v564
        %v616 = vpack.c.b16 %v567, %v566
        %v617 = vpack.c.b16 %v569, %v568
        %v618 = vpack.c.b16 %v571, %v570
        %v619 = vpack.c.b16 %v573, %v572
        %v620 = vpack.c.b16 %v575, %v574
        %v621 = vpack.c.b16 %v577, %v576
        %v622 = vpack.c.b16 %v579, %v578
        %v623 = vpack.c.b16 %v581, %v580
        %v624 = vpack.c.b16 %v583, %v582
        %v625 = vpack.c.b16 %v585, %v584
        %v626 = vpack.c.b16 %v587, %v586
        %v627 = vpack.c.b16 %v589, %v588
        %v628 = vpack.c.b16 %v591, %v590
        %v629 = vpack.c.b16 %v593, %v592
        %v630 = vpack.c.b16 %v595, %v594
        %v631 = vpack.c.b16 %v597, %v596
        %v632 = vpack.c.b16 %v599, %v598
        %v633 = vpack.c.b16 %v601, %v600
        %v682 = vunpack.c.l.b16 %v458
        %v683 = vunpack.c.l.b16 %v459
        %v684 = vunpack.c.l.b16 %v460
        %v685 = vunpack.c.l.b16 %v461
        %v686 = vunpack.c.l.b16 %v462
        %v687 = vunpack.c.l.b16 %v463
        %v688 = vunpack.c.l.b16 %v464
        %v689 = vunpack.c.l.b16 %v465
        %v690 = vunpack.c.l.b16 %v466
        %v691 = vunpack.c.l.b16 %v467
        %v692 = vunpack.c.l.b16 %v468
        %v693 = vunpack.c.l.b16 %v469
        %v694 = vunpack.c.l.b16 %v470
        %v695 = vunpack.c.l.b16 %v471
        %v696 = vunpack.c.l.b16 %v472
        %v697 = vunpack.c.l.b16 %v473
        %v698 = vpack.c.b16 %v683, %v682
        %v699 = vpack.c.b16 %v685, %v684
        %v700 = vpack.c.b16 %v687, %v686
        %v701 = vpack.c.b16 %v689, %v688
        %v702 = vpack.c.b16 %v691, %v690
        %v703 = vpack.c.b16 %v693, %v692
        %v704 = vpack.c.b16 %v695, %v694
        %v705 = vpack.c.b16 %v697, %v696
        %714 = vmatprep.subr.bf16.mxu0 0
        %715 = vmatpush1.bf16.msra.mxu0 %v698
        %716 = vmatprep.subr.bf16.mxu0 0
        %717 = vmatpush1.bf16.msra.mxu0 %v699
        %718 = vmatprep.subr.bf16.mxu0 0
        %719 = vmatpush1.bf16.msra.mxu0 %v700
        %720 = vmatprep.subr.bf16.mxu0 0
        %721 = vmatpush1.bf16.msra.mxu0 %v701
        %722 = vmatprep.subr.bf16.mxu0 0
        %723 = vmatpush1.bf16.msra.mxu0 %v702
        %724 = vmatprep.subr.bf16.mxu0 0
        %725 = vmatpush1.bf16.msra.mxu0 %v703
        %726 = vmatprep.subr.bf16.mxu0 0
        %727 = vmatpush1.bf16.msra.mxu0 %v704
        %728 = vmatprep.subr.bf16.mxu0 0
        %729 = vmatpush1.bf16.msra.mxu0 %v705
        %730 = vmatprep.subr.bf16.mxu0 0
        %731 = vmatpush1.bf16.msra.mxu0 0
        %732 = vmatprep.subr.bf16.mxu0 0
        %733 = vmatpush1.bf16.msra.mxu0 0
        %734 = vmatprep.subr.bf16.mxu0 0
        %735 = vmatpush1.bf16.msra.mxu0 0
        %736 = vmatprep.subr.bf16.mxu0 0
        %737 = vmatpush1.bf16.msra.mxu0 0
        %738 = vmatprep.subr.bf16.mxu0 0
        %739 = vmatpush1.bf16.msra.mxu0 0
        %740 = vmatprep.subr.bf16.mxu0 0
        %741 = vmatpush1.bf16.msra.mxu0 0
        %742 = vmatprep.subr.bf16.mxu0 0
        %743 = vmatpush1.bf16.msra.mxu0 0
        %744 = vmatprep.subr.bf16.mxu0 0
        %745 = vmatpush1.bf16.msra.mxu0 0
        %746 = vmatprep.mubr.bf16.mxu0 0
        %747 = vmatmul.mubr.bf16.gmra.mrb[0].mxu0 %v602
        %v748 = vpop.f32.mrb[0].mxu0
        %v749 = vadd.f32 0.0, %v748
        %v750 = vpop.f32.mrb[0].mxu0
        %v751 = vpop.f32.mrb[0].mxu0
        %v752 = vadd.f32 0.0, %v751
        %v753 = vpop.f32.mrb[0].mxu0
        %754 = vmatprep.mubr.bf16.mxu0 0
        %755 = vmatmul.mubr.bf16.gmra.mrb[0].mxu0 %v603
        %v756 = vpop.f32.mrb[0].mxu0
        %v757 = vadd.f32 0.0, %v756
        %v758 = vpop.f32.mrb[0].mxu0
        %v759 = vpop.f32.mrb[0].mxu0
        %v760 = vadd.f32 0.0, %v759
        %v761 = vpop.f32.mrb[0].mxu0
        %762 = vmatprep.mubr.bf16.mxu0 0
        %763 = vmatmul.mubr.bf16.gmra.mrb[0].mxu0 %v604
        %v764 = vpop.f32.mrb[0].mxu0
        %v765 = vadd.f32 0.0, %v764
        %v766 = vpop.f32.mrb[0].mxu0
        %v767 = vpop.f32.mrb[0].mxu0
        %v768 = vadd.f32 0.0, %v767
        %v769 = vpop.f32.mrb[0].mxu0
        %770 = vmatprep.mubr.bf16.mxu0 0
        %771 = vmatmul.mubr.bf16.gmra.mrb[0].mxu0 %v605
        %v772 = vpop.f32.mrb[0].mxu0
        %v773 = vadd.f32 0.0, %v772
        %v774 = vpop.f32.mrb[0].mxu0
        %v775 = vpop.f32.mrb[0].mxu0
        %v776 = vadd.f32 0.0, %v775
        %v777 = vpop.f32.mrb[0].mxu0
        %778 = vmatprep.mubr.bf16.mxu0 0
        %779 = vmatmul.mubr.bf16.gmra.mrb[0].mxu0 %v606
        %v780 = vpop.f32.mrb[0].mxu0
        %v781 = vadd.f32 0.0, %v780
        %v782 = vpop.f32.mrb[0].mxu0
        %v783 = vpop.f32.mrb[0].mxu0
        %v784 = vadd.f32 0.0, %v783
        %v785 = vpop.f32.mrb[0].mxu0
        %786 = vmatprep.mubr.bf16.mxu0 0
        %787 = vmatmul.mubr.bf16.gmra.mrb[0].mxu0 %v607
        %v788 = vpop.f32.mrb[0].mxu0
        %v789 = vadd.f32 0.0, %v788
        %v790 = vpop.f32.mrb[0].mxu0
        %v791 = vpop.f32.mrb[0].mxu0
        %v792 = vadd.f32 0.0, %v791
        %v793 = vpop.f32.mrb[0].mxu0
        %794 = vmatprep.mubr.bf16.mxu0 0
        %795 = vmatmul.mubr.bf16.gmra.mrb[0].mxu0 %v608
        %v796 = vpop.f32.mrb[0].mxu0
        %v797 = vadd.f32 0.0, %v796
        %v798 = vpop.f32.mrb[0].mxu0
        %v799 = vpop.f32.mrb[0].mxu0
        %v800 = vadd.f32 0.0, %v799
        %v801 = vpop.f32.mrb[0].mxu0
        %802 = vmatprep.mubr.bf16.mxu0 0
        %803 = vmatmul.mubr.bf16.gmra.mrb[0].mxu0 %v609
        %v804 = vpop.f32.mrb[0].mxu0
        %v805 = vadd.f32 0.0, %v804
        %v806 = vpop.f32.mrb[0].mxu0
        %v807 = vpop.f32.mrb[0].mxu0
        %v808 = vadd.f32 0.0, %v807
        %v809 = vpop.f32.mrb[0].mxu0
        %810 = vmatprep.mubr.bf16.mxu0 0
        %811 = vmatmul.mubr.bf16.gmra.mrb[0].mxu0 %v610
        %v812 = vpop.f32.mrb[0].mxu0
        %v813 = vadd.f32 0.0, %v812
        %v814 = vpop.f32.mrb[0].mxu0
        %v815 = vpop.f32.mrb[0].mxu0
        %v816 = vadd.f32 0.0, %v815
        %v817 = vpop.f32.mrb[0].mxu0
        %818 = vmatprep.mubr.bf16.mxu0 0
        %819 = vmatmul.mubr.bf16.gmra.mrb[0].mxu0 %v611
        %v820 = vpop.f32.mrb[0].mxu0
        %v821 = vadd.f32 0.0, %v820
        %v822 = vpop.f32.mrb[0].mxu0
        %v823 = vpop.f32.mrb[0].mxu0
        %v824 = vadd.f32 0.0, %v823
        %v825 = vpop.f32.mrb[0].mxu0
        %826 = vmatprep.mubr.bf16.mxu0 0
        %827 = vmatmul.mubr.bf16.gmra.mrb[0].mxu0 %v612
        %v828 = vpop.f32.mrb[0].mxu0
        %v829 = vadd.f32 0.0, %v828
        %v830 = vpop.f32.mrb[0].mxu0
        %v831 = vpop.f32.mrb[0].mxu0
        %v832 = vadd.f32 0.0, %v831
        %v833 = vpop.f32.mrb[0].mxu0
        %834 = vmatprep.mubr.bf16.mxu0 0
        %835 = vmatmul.mubr.bf16.gmra.mrb[0].mxu0 %v613
        %v836 = vpop.f32.mrb[0].mxu0
        %v837 = vadd.f32 0.0, %v836
        %v838 = vpop.f32.mrb[0].mxu0
        %v839 = vpop.f32.mrb[0].mxu0
        %v840 = vadd.f32 0.0, %v839
        %v841 = vpop.f32.mrb[0].mxu0
        %842 = vmatprep.mubr.bf16.mxu0 0
        %843 = vmatmul.mubr.bf16.gmra.mrb[0].mxu0 %v614
        %v844 = vpop.f32.mrb[0].mxu0
        %v845 = vadd.f32 0.0, %v844
        %v846 = vpop.f32.mrb[0].mxu0
        %v847 = vpop.f32.mrb[0].mxu0
        %v848 = vadd.f32 0.0, %v847
        %v849 = vpop.f32.mrb[0].mxu0
        %850 = vmatprep.mubr.bf16.mxu0 0
        %851 = vmatmul.mubr.bf16.gmra.mrb[0].mxu0 %v615
        %v852 = vpop.f32.mrb[0].mxu0
        %v853 = vadd.f32 0.0, %v852
        %v854 = vpop.f32.mrb[0].mxu0
        %v855 = vpop.f32.mrb[0].mxu0
        %v856 = vadd.f32 0.0, %v855
        %v857 = vpop.f32.mrb[0].mxu0
        %858 = vmatprep.mubr.bf16.mxu0 0
        %859 = vmatmul.mubr.bf16.gmra.mrb[0].mxu0 %v616
        %v860 = vpop.f32.mrb[0].mxu0
        %v861 = vadd.f32 0.0, %v860
        %v862 = vpop.f32.mrb[0].mxu0
        %v863 = vpop.f32.mrb[0].mxu0
        %v864 = vadd.f32 0.0, %v863
        %v865 = vpop.f32.mrb[0].mxu0
        %866 = vmatprep.mubr.bf16.mxu0 0
        %867 = vmatmul.mubr.bf16.gmra.mrb[0].mxu0 %v617
        %v868 = vpop.f32.mrb[0].mxu0
        %v869 = vadd.f32 0.0, %v868
        %v870 = vpop.f32.mrb[0].mxu0
        %v871 = vpop.f32.mrb[0].mxu0
        %v872 = vadd.f32 0.0, %v871
        %v873 = vpop.f32.mrb[0].mxu0
        %874 = vmatprep.mubr.bf16.mxu0 0
        %875 = vmatmul.mubr.bf16.gmra.mrb[0].mxu0 %v618
        %v876 = vpop.f32.mrb[0].mxu0
        %v877 = vadd.f32 0.0, %v876
        %v878 = vpop.f32.mrb[0].mxu0
        %v879 = vpop.f32.mrb[0].mxu0
        %v880 = vadd.f32 0.0, %v879
        %v881 = vpop.f32.mrb[0].mxu0
        %882 = vmatprep.mubr.bf16.mxu0 0
        %883 = vmatmul.mubr.bf16.gmra.mrb[0].mxu0 %v619
        %v884 = vpop.f32.mrb[0].mxu0
        %v885 = vadd.f32 0.0, %v884
        %v886 = vpop.f32.mrb[0].mxu0
        %v887 = vpop.f32.mrb[0].mxu0
        %v888 = vadd.f32 0.0, %v887
        %v889 = vpop.f32.mrb[0].mxu0
        %890 = vmatprep.mubr.bf16.mxu0 0
        %891 = vmatmul.mubr.bf16.gmra.mrb[0].mxu0 %v620
        %v892 = vpop.f32.mrb[0].mxu0
        %v893 = vadd.f32 0.0, %v892
        %v894 = vpop.f32.mrb[0].mxu0
        %v895 = vpop.f32.mrb[0].mxu0
        %v896 = vadd.f32 0.0, %v895
        %v897 = vpop.f32.mrb[0].mxu0
        %898 = vmatprep.mubr.bf16.mxu0 0
        %899 = vmatmul.mubr.bf16.gmra.mrb[0].mxu0 %v621
        %v900 = vpop.f32.mrb[0].mxu0
        %v901 = vadd.f32 0.0, %v900
        %v902 = vpop.f32.mrb[0].mxu0
        %v903 = vpop.f32.mrb[0].mxu0
        %v904 = vadd.f32 0.0, %v903
        %v905 = vpop.f32.mrb[0].mxu0
        %906 = vmatprep.mubr.bf16.mxu0 0
        %907 = vmatmul.mubr.bf16.gmra.mrb[0].mxu0 %v622
        %v908 = vpop.f32.mrb[0].mxu0
        %v909 = vadd.f32 0.0, %v908
        %v910 = vpop.f32.mrb[0].mxu0
        %v911 = vpop.f32.mrb[0].mxu0
        %v912 = vadd.f32 0.0, %v911
        %v913 = vpop.f32.mrb[0].mxu0
        %914 = vmatprep.mubr.bf16.mxu0 0
        %915 = vmatmul.mubr.bf16.gmra.mrb[0].mxu0 %v623
        %v916 = vpop.f32.mrb[0].mxu0
        %v917 = vadd.f32 0.0, %v916
        %v918 = vpop.f32.mrb[0].mxu0
        %v919 = vpop.f32.mrb[0].mxu0
        %v920 = vadd.f32 0.0, %v919
        %v921 = vpop.f32.mrb[0].mxu0
        %922 = vmatprep.mubr.bf16.mxu0 0
        %923 = vmatmul.mubr.bf16.gmra.mrb[0].mxu0 %v624
        %v924 = vpop.f32.mrb[0].mxu0
        %v925 = vadd.f32 0.0, %v924
        %v926 = vpop.f32.mrb[0].mxu0
        %v927 = vpop.f32.mrb[0].mxu0
        %v928 = vadd.f32 0.0, %v927
        %v929 = vpop.f32.mrb[0].mxu0
        %930 = vmatprep.mubr.bf16.mxu0 0
        %931 = vmatmul.mubr.bf16.gmra.mrb[0].mxu0 %v625
        %v932 = vpop.f32.mrb[0].mxu0
        %v933 = vadd.f32 0.0, %v932
        %v934 = vpop.f32.mrb[0].mxu0
        %v935 = vpop.f32.mrb[0].mxu0
        %v936 = vadd.f32 0.0, %v935
        %v937 = vpop.f32.mrb[0].mxu0
        %938 = vmatprep.mubr.bf16.mxu0 0
        %939 = vmatmul.mubr.bf16.gmra.mrb[0].mxu0 %v626
        %v940 = vpop.f32.mrb[0].mxu0
        %v941 = vadd.f32 0.0, %v940
        %v942 = vpop.f32.mrb[0].mxu0
        %v943 = vpop.f32.mrb[0].mxu0
        %v944 = vadd.f32 0.0, %v943
        %v945 = vpop.f32.mrb[0].mxu0
        %946 = vmatprep.mubr.bf16.mxu0 0
        %947 = vmatmul.mubr.bf16.gmra.mrb[0].mxu0 %v627
        %v948 = vpop.f32.mrb[0].mxu0
        %v949 = vadd.f32 0.0, %v948
        %v950 = vpop.f32.mrb[0].mxu0
        %v951 = vpop.f32.mrb[0].mxu0
        %v952 = vadd.f32 0.0, %v951
        %v953 = vpop.f32.mrb[0].mxu0
        %954 = vmatprep.mubr.bf16.mxu0 0
        %955 = vmatmul.mubr.bf16.gmra.mrb[0].mxu0 %v628
        %v956 = vpop.f32.mrb[0].mxu0
        %v957 = vadd.f32 0.0, %v956
        %v958 = vpop.f32.mrb[0].mxu0
        %v959 = vpop.f32.mrb[0].mxu0
        %v960 = vadd.f32 0.0, %v959
        %v961 = vpop.f32.mrb[0].mxu0
        %962 = vmatprep.mubr.bf16.mxu0 0
        %963 = vmatmul.mubr.bf16.gmra.mrb[0].mxu0 %v629
        %v964 = vpop.f32.mrb[0].mxu0
        %v965 = vadd.f32 0.0, %v964
        %v966 = vpop.f32.mrb[0].mxu0
        %v967 = vpop.f32.mrb[0].mxu0
        %v968 = vadd.f32 0.0, %v967
        %v969 = vpop.f32.mrb[0].mxu0
        %970 = vmatprep.mubr.bf16.mxu0 0
        %971 = vmatmul.mubr.bf16.gmra.mrb[0].mxu0 %v630
        %v972 = vpop.f32.mrb[0].mxu0
        %v973 = vadd.f32 0.0, %v972
        %v974 = vpop.f32.mrb[0].mxu0
        %v975 = vpop.f32.mrb[0].mxu0
        %v976 = vadd.f32 0.0, %v975
        %v977 = vpop.f32.mrb[0].mxu0
        %978 = vmatprep.mubr.bf16.mxu0 0
        %979 = vmatmul.mubr.bf16.gmra.mrb[0].mxu0 %v631
        %v980 = vpop.f32.mrb[0].mxu0
        %v981 = vadd.f32 0.0, %v980
        %v982 = vpop.f32.mrb[0].mxu0
        %v983 = vpop.f32.mrb[0].mxu0
        %v984 = vadd.f32 0.0, %v983
        %v985 = vpop.f32.mrb[0].mxu0
        %986 = vmatprep.mubr.bf16.mxu0 0
        %987 = vmatmul.mubr.bf16.gmra.mrb[0].mxu0 %v632
        %v988 = vpop.f32.mrb[0].mxu0
        %v989 = vadd.f32 0.0, %v988
        %v990 = vpop.f32.mrb[0].mxu0
        %v991 = vpop.f32.mrb[0].mxu0
        %v992 = vadd.f32 0.0, %v991
        %v993 = vpop.f32.mrb[0].mxu0
        %994 = vmatprep.mubr.bf16.mxu0 0
        %995 = vmatmul.mubr.bf16.gmra.mrb[0].mxu0 %v633
        %v996 = vpop.f32.mrb[0].mxu0
        %v997 = vadd.f32 0.0, %v996
        %v998 = vpop.f32.mrb[0].mxu0
        %v999 = vpop.f32.mrb[0].mxu0
        %v1000 = vadd.f32 0.0, %v999
        %v1001 = vpop.f32.mrb[0].mxu0
        %1002 = vdwg.mxu0
        %v1003 = vadd.f32 %v330, %v749
        %v1004 = vadd.f32 %v331, %v752
        %v1005 = vadd.f32 %v332, %v757
        %v1006 = vadd.f32 %v333, %v760
        %v1007 = vadd.f32 %v334, %v765
        %v1008 = vadd.f32 %v335, %v768
        %v1009 = vadd.f32 %v336, %v773
        %v1010 = vadd.f32 %v337, %v776
        %v1011 = vadd.f32 %v338, %v781
        %v1012 = vadd.f32 %v339, %v784
        %v1013 = vadd.f32 %v340, %v789
        %v1014 = vadd.f32 %v341, %v792
        %v1015 = vadd.f32 %v342, %v797
        %v1016 = vadd.f32 %v343, %v800
        %v1017 = vadd.f32 %v344, %v805
        %v1018 = vadd.f32 %v345, %v808
        %v1019 = vadd.f32 %v346, %v813
        %v1020 = vadd.f32 %v347, %v816
        %v1021 = vadd.f32 %v348, %v821
        %v1022 = vadd.f32 %v349, %v824
        %v1023 = vadd.f32 %v350, %v829
        %v1024 = vadd.f32 %v351, %v832
        %v1025 = vadd.f32 %v352, %v837
        %v1026 = vadd.f32 %v353, %v840
        %v1027 = vadd.f32 %v354, %v845
        %v1028 = vadd.f32 %v355, %v848
        %v1029 = vadd.f32 %v356, %v853
        %v1030 = vadd.f32 %v357, %v856
        %v1031 = vadd.f32 %v358, %v861
        %v1032 = vadd.f32 %v359, %v864
        %v1033 = vadd.f32 %v360, %v869
        %v1034 = vadd.f32 %v361, %v872
        %v1035 = vadd.f32 %v362, %v877
        %v1036 = vadd.f32 %v363, %v880
        %v1037 = vadd.f32 %v364, %v885
        %v1038 = vadd.f32 %v365, %v888
        %v1039 = vadd.f32 %v366, %v893
        %v1040 = vadd.f32 %v367, %v896
        %v1041 = vadd.f32 %v368, %v901
        %v1042 = vadd.f32 %v369, %v904
        %v1043 = vadd.f32 %v370, %v909
        %v1044 = vadd.f32 %v371, %v912
        %v1045 = vadd.f32 %v372, %v917
        %v1046 = vadd.f32 %v373, %v920
        %v1047 = vadd.f32 %v374, %v925
        %v1048 = vadd.f32 %v375, %v928
        %v1049 = vadd.f32 %v376, %v933
        %v1050 = vadd.f32 %v377, %v936
        %v1051 = vadd.f32 %v378, %v941
        %v1052 = vadd.f32 %v379, %v944
        %v1053 = vadd.f32 %v380, %v949
        %v1054 = vadd.f32 %v381, %v952
        %v1055 = vadd.f32 %v382, %v957
        %v1056 = vadd.f32 %v383, %v960
        %v1057 = vadd.f32 %v384, %v965
        %v1058 = vadd.f32 %v385, %v968
        %v1059 = vadd.f32 %v386, %v973
        %v1060 = vadd.f32 %v387, %v976
        %v1061 = vadd.f32 %v388, %v981
        %v1062 = vadd.f32 %v389, %v984
        %v1063 = vadd.f32 %v390, %v989
        %v1064 = vadd.f32 %v391, %v992
        %v1065 = vadd.f32 %v392, %v997
        %v1066 = vadd.f32 %v393, %v1000
        %1067 = vst [vmem:[#allocation2] sm:$0xff] %v1003
        %1068 = vst [vmem:[#allocation2 + $0x8] sm:$0xff] %v1004
        %1069 = vst [vmem:[#allocation2 + $0x10] sm:$0xff] %v1005
        %1070 = vst [vmem:[#allocation2 + $0x18] sm:$0xff] %v1006
        %1071 = vst [vmem:[#allocation2 + $0x20] sm:$0xff] %v1007
        %1072 = vst [vmem:[#allocation2 + $0x28] sm:$0xff] %v1008
        %1073 = vst [vmem:[#allocation2 + $0x30] sm:$0xff] %v1009
        %1074 = vst [vmem:[#allocation2 + $0x38] sm:$0xff] %v1010
        %1075 = vst [vmem:[#allocation2 + $0x40] sm:$0xff] %v1011
        %1076 = vst [vmem:[#allocation2 + $0x48] sm:$0xff] %v1012
        %1077 = vst [vmem:[#allocation2 + $0x50] sm:$0xff] %v1013
        %1078 = vst [vmem:[#allocation2 + $0x58] sm:$0xff] %v1014
        %1079 = vst [vmem:[#allocation2 + $0x60] sm:$0xff] %v1015
        %1080 = vst [vmem:[#allocation2 + $0x68] sm:$0xff] %v1016
        %1081 = vst [vmem:[#allocation2 + $0x70] sm:$0xff] %v1017
        %1082 = vst [vmem:[#allocation2 + $0x78] sm:$0xff] %v1018
        %1083 = vst [vmem:[#allocation2 + $0x80] sm:$0xff] %v1019
        %1084 = vst [vmem:[#allocation2 + $0x88] sm:$0xff] %v1020
        %1085 = vst [vmem:[#allocation2 + $0x90] sm:$0xff] %v1021
        %1086 = vst [vmem:[#allocation2 + $0x98] sm:$0xff] %v1022
        %1087 = vst [vmem:[#allocation2 + $0xa0] sm:$0xff] %v1023
        %1088 = vst [vmem:[#allocation2 + $0xa8] sm:$0xff] %v1024
        %1089 = vst [vmem:[#allocation2 + $0xb0] sm:$0xff] %v1025
        %1090 = vst [vmem:[#allocation2 + $0xb8] sm:$0xff] %v1026
        %1091 = vst [vmem:[#allocation2 + $0xc0] sm:$0xff] %v1027
        %1092 = vst [vmem:[#allocation2 + $0xc8] sm:$0xff] %v1028
        %1093 = vst [vmem:[#allocation2 + $0xd0] sm:$0xff] %v1029
        %1094 = vst [vmem:[#allocation2 + $0xd8] sm:$0xff] %v1030
        %1095 = vst [vmem:[#allocation2 + $0xe0] sm:$0xff] %v1031
        %1096 = vst [vmem:[#allocation2 + $0xe8] sm:$0xff] %v1032
        %1097 = vst [vmem:[#allocation2 + $0xf0] sm:$0xff] %v1033
        %1098 = vst [vmem:[#allocation2 + $0xf8] sm:$0xff] %v1034
        %1099 = vst [vmem:[#allocation2 + $0x100] sm:$0xff] %v1035
        %1100 = vst [vmem:[#allocation2 + $0x108] sm:$0xff] %v1036
        %1101 = vst [vmem:[#allocation2 + $0x110] sm:$0xff] %v1037
        %1102 = vst [vmem:[#allocation2 + $0x118] sm:$0xff] %v1038
        %1103 = vst [vmem:[#allocation2 + $0x120] sm:$0xff] %v1039
        %1104 = vst [vmem:[#allocation2 + $0x128] sm:$0xff] %v1040
        %1105 = vst [vmem:[#allocation2 + $0x130] sm:$0xff] %v1041
        %1106 = vst [vmem:[#allocation2 + $0x138] sm:$0xff] %v1042
        %1107 = vst [vmem:[#allocation2 + $0x140] sm:$0xff] %v1043
        %1108 = vst [vmem:[#allocation2 + $0x148] sm:$0xff] %v1044
        %1109 = vst [vmem:[#allocation2 + $0x150] sm:$0xff] %v1045
        %1110 = vst [vmem:[#allocation2 + $0x158] sm:$0xff] %v1046
        %1111 = vst [vmem:[#allocation2 + $0x160] sm:$0xff] %v1047
        %1112 = vst [vmem:[#allocation2 + $0x168] sm:$0xff] %v1048
        %1113 = vst [vmem:[#allocation2 + $0x170] sm:$0xff] %v1049
        %1114 = vst [vmem:[#allocation2 + $0x178] sm:$0xff] %v1050
        %1115 = vst [vmem:[#allocation2 + $0x180] sm:$0xff] %v1051
        %1116 = vst [vmem:[#allocation2 + $0x188] sm:$0xff] %v1052
        %1117 = vst [vmem:[#allocation2 + $0x190] sm:$0xff] %v1053
        %1118 = vst [vmem:[#allocation2 + $0x198] sm:$0xff] %v1054
        %1119 = vst [vmem:[#allocation2 + $0x1a0] sm:$0xff] %v1055
        %1120 = vst [vmem:[#allocation2 + $0x1a8] sm:$0xff] %v1056
        %1121 = vst [vmem:[#allocation2 + $0x1b0] sm:$0xff] %v1057
        %1122 = vst [vmem:[#allocation2 + $0x1b8] sm:$0xff] %v1058
        %1123 = vst [vmem:[#allocation2 + $0x1c0] sm:$0xff] %v1059
        %1124 = vst [vmem:[#allocation2 + $0x1c8] sm:$0xff] %v1060
        %1125 = vst [vmem:[#allocation2 + $0x1d0] sm:$0xff] %v1061
        %1126 = vst [vmem:[#allocation2 + $0x1d8] sm:$0xff] %v1062
        %1127 = vst [vmem:[#allocation2 + $0x1e0] sm:$0xff] %v1063
        %1128 = vst [vmem:[#allocation2 + $0x1e8] sm:$0xff] %v1064
        %1129 = vst [vmem:[#allocation2 + $0x1f0] sm:$0xff] %v1065
        %1130 = vst [vmem:[#allocation2 + $0x1f8] sm:$0xff] %v1066
        // Predicated region
        $region49: #{tpu_custom_call.1} parent=31 // pred_check
          %p1131 = pneg %p262
        $region50: #{tpu_custom_call.1} parent=31 // pred_check_branch
          %1133 = sbr.rel (%p1131) target = $region52
        $region51: #{tpu_custom_call.1} parent=31 // pred_region
          %v1134 = vld [vmem:[#allocation2] sm:$0xff]
          %v1135 = vld [vmem:[#allocation2 + $0x8] sm:$0xff]
          %v1136 = vld [vmem:[#allocation2 + $0x10] sm:$0xff]
          %v1137 = vld [vmem:[#allocation2 + $0x18] sm:$0xff]
          %v1138 = vld [vmem:[#allocation2 + $0x20] sm:$0xff]
          %v1139 = vld [vmem:[#allocation2 + $0x28] sm:$0xff]
          %v1140 = vld [vmem:[#allocation2 + $0x30] sm:$0xff]
          %v1141 = vld [vmem:[#allocation2 + $0x38] sm:$0xff]
          %v1142 = vld [vmem:[#allocation2 + $0x40] sm:$0xff]
          %v1143 = vld [vmem:[#allocation2 + $0x48] sm:$0xff]
          %v1144 = vld [vmem:[#allocation2 + $0x50] sm:$0xff]
          %v1145 = vld [vmem:[#allocation2 + $0x58] sm:$0xff]
          %v1146 = vld [vmem:[#allocation2 + $0x60] sm:$0xff]
          %v1147 = vld [vmem:[#allocation2 + $0x68] sm:$0xff]
          %v1148 = vld [vmem:[#allocation2 + $0x70] sm:$0xff]
          %v1149 = vld [vmem:[#allocation2 + $0x78] sm:$0xff]
          %v1150 = vld [vmem:[#allocation2 + $0x80] sm:$0xff]
          %v1151 = vld [vmem:[#allocation2 + $0x88] sm:$0xff]
          %v1152 = vld [vmem:[#allocation2 + $0x90] sm:$0xff]
          %v1153 = vld [vmem:[#allocation2 + $0x98] sm:$0xff]
          %v1154 = vld [vmem:[#allocation2 + $0xa0] sm:$0xff]
          %v1155 = vld [vmem:[#allocation2 + $0xa8] sm:$0xff]
          %v1156 = vld [vmem:[#allocation2 + $0xb0] sm:$0xff]
          %v1157 = vld [vmem:[#allocation2 + $0xb8] sm:$0xff]
          %v1158 = vld [vmem:[#allocation2 + $0xc0] sm:$0xff]
          %v1159 = vld [vmem:[#allocation2 + $0xc8] sm:$0xff]
          %v1160 = vld [vmem:[#allocation2 + $0xd0] sm:$0xff]
          %v1161 = vld [vmem:[#allocation2 + $0xd8] sm:$0xff]
          %v1162 = vld [vmem:[#allocation2 + $0xe0] sm:$0xff]
          %v1163 = vld [vmem:[#allocation2 + $0xe8] sm:$0xff]
          %v1164 = vld [vmem:[#allocation2 + $0xf0] sm:$0xff]
          %v1165 = vld [vmem:[#allocation2 + $0xf8] sm:$0xff]
          %v1166 = vld [vmem:[#allocation2 + $0x100] sm:$0xff]
          %v1167 = vld [vmem:[#allocation2 + $0x108] sm:$0xff]
          %v1168 = vld [vmem:[#allocation2 + $0x110] sm:$0xff]
          %v1169 = vld [vmem:[#allocation2 + $0x118] sm:$0xff]
          %v1170 = vld [vmem:[#allocation2 + $0x120] sm:$0xff]
          %v1171 = vld [vmem:[#allocation2 + $0x128] sm:$0xff]
          %v1172 = vld [vmem:[#allocation2 + $0x130] sm:$0xff]
          %v1173 = vld [vmem:[#allocation2 + $0x138] sm:$0xff]
          %v1174 = vld [vmem:[#allocation2 + $0x140] sm:$0xff]
          %v1175 = vld [vmem:[#allocation2 + $0x148] sm:$0xff]
          %v1176 = vld [vmem:[#allocation2 + $0x150] sm:$0xff]
          %v1177 = vld [vmem:[#allocation2 + $0x158] sm:$0xff]
          %v1178 = vld [vmem:[#allocation2 + $0x160] sm:$0xff]
          %v1179 = vld [vmem:[#allocation2 + $0x168] sm:$0xff]
          %v1180 = vld [vmem:[#allocation2 + $0x170] sm:$0xff]
          %v1181 = vld [vmem:[#allocation2 + $0x178] sm:$0xff]
          %v1182 = vld [vmem:[#allocation2 + $0x180] sm:$0xff]
          %v1183 = vld [vmem:[#allocation2 + $0x188] sm:$0xff]
          %v1184 = vld [vmem:[#allocation2 + $0x190] sm:$0xff]
          %v1185 = vld [vmem:[#allocation2 + $0x198] sm:$0xff]
          %v1186 = vld [vmem:[#allocation2 + $0x1a0] sm:$0xff]
          %v1187 = vld [vmem:[#allocation2 + $0x1a8] sm:$0xff]
          %v1188 = vld [vmem:[#allocation2 + $0x1b0] sm:$0xff]
          %v1189 = vld [vmem:[#allocation2 + $0x1b8] sm:$0xff]
          %v1190 = vld [vmem:[#allocation2 + $0x1c0] sm:$0xff]
          %v1191 = vld [vmem:[#allocation2 + $0x1c8] sm:$0xff]
          %v1192 = vld [vmem:[#allocation2 + $0x1d0] sm:$0xff]
          %v1193 = vld [vmem:[#allocation2 + $0x1d8] sm:$0xff]
          %v1194 = vld [vmem:[#allocation2 + $0x1e0] sm:$0xff]
          %v1195 = vld [vmem:[#allocation2 + $0x1e8] sm:$0xff]
          %v1196 = vld [vmem:[#allocation2 + $0x1f0] sm:$0xff]
          %v1197 = vld [vmem:[#allocation2 + $0x1f8] sm:$0xff]
          %v1198 = vld [vmem:[#allocation8] sm:$0x1]
          %v1200 = vlaneseq
          %v1201 = vshrl.u32 %v1200, 7
          %v1202 = vsub.s32 0, %v1201
          %v1203 = vrot.slane %v1198, %v1202
          %v1205 = vadd.f32 %v1134, %v1203
          %v1206 = vadd.f32 %v1135, %v1203
          %v1207 = vadd.f32 %v1136, %v1203
          %v1208 = vadd.f32 %v1137, %v1203
          %v1209 = vadd.f32 %v1138, %v1203
          %v1210 = vadd.f32 %v1139, %v1203
          %v1211 = vadd.f32 %v1140, %v1203
          %v1212 = vadd.f32 %v1141, %v1203
          %v1213 = vadd.f32 %v1142, %v1203
          %v1214 = vadd.f32 %v1143, %v1203
          %v1215 = vadd.f32 %v1144, %v1203
          %v1216 = vadd.f32 %v1145, %v1203
          %v1217 = vadd.f32 %v1146, %v1203
          %v1218 = vadd.f32 %v1147, %v1203
          %v1219 = vadd.f32 %v1148, %v1203
          %v1220 = vadd.f32 %v1149, %v1203
          %v1221 = vadd.f32 %v1150, %v1203
          %v1222 = vadd.f32 %v1151, %v1203
          %v1223 = vadd.f32 %v1152, %v1203
          %v1224 = vadd.f32 %v1153, %v1203
          %v1225 = vadd.f32 %v1154, %v1203
          %v1226 = vadd.f32 %v1155, %v1203
          %v1227 = vadd.f32 %v1156, %v1203
          %v1228 = vadd.f32 %v1157, %v1203
          %v1229 = vadd.f32 %v1158, %v1203
          %v1230 = vadd.f32 %v1159, %v1203
          %v1231 = vadd.f32 %v1160, %v1203
          %v1232 = vadd.f32 %v1161, %v1203
          %v1233 = vadd.f32 %v1162, %v1203
          %v1234 = vadd.f32 %v1163, %v1203
          %v1235 = vadd.f32 %v1164, %v1203
          %v1236 = vadd.f32 %v1165, %v1203
          %v1237 = vadd.f32 %v1166, %v1203
          %v1238 = vadd.f32 %v1167, %v1203
          %v1239 = vadd.f32 %v1168, %v1203
          %v1240 = vadd.f32 %v1169, %v1203
          %v1241 = vadd.f32 %v1170, %v1203
          %v1242 = vadd.f32 %v1171, %v1203
          %v1243 = vadd.f32 %v1172, %v1203
          %v1244 = vadd.f32 %v1173, %v1203
          %v1245 = vadd.f32 %v1174, %v1203
          %v1246 = vadd.f32 %v1175, %v1203
          %v1247 = vadd.f32 %v1176, %v1203
          %v1248 = vadd.f32 %v1177, %v1203
          %v1249 = vadd.f32 %v1178, %v1203
          %v1250 = vadd.f32 %v1179, %v1203
          %v1251 = vadd.f32 %v1180, %v1203
          %v1252 = vadd.f32 %v1181, %v1203
          %v1253 = vadd.f32 %v1182, %v1203
          %v1254 = vadd.f32 %v1183, %v1203
          %v1255 = vadd.f32 %v1184, %v1203
          %v1256 = vadd.f32 %v1185, %v1203
          %v1257 = vadd.f32 %v1186, %v1203
          %v1258 = vadd.f32 %v1187, %v1203
          %v1259 = vadd.f32 %v1188, %v1203
          %v1260 = vadd.f32 %v1189, %v1203
          %v1261 = vadd.f32 %v1190, %v1203
          %v1262 = vadd.f32 %v1191, %v1203
          %v1263 = vadd.f32 %v1192, %v1203
          %v1264 = vadd.f32 %v1193, %v1203
          %v1265 = vadd.f32 %v1194, %v1203
          %v1266 = vadd.f32 %v1195, %v1203
          %v1267 = vadd.f32 %v1196, %v1203
          %v1268 = vadd.f32 %v1197, %v1203
          %v1269 = vmax.f32 %v1205, 0.0
          %v1270 = vmax.f32 %v1206, 0.0
          %v1271 = vmax.f32 %v1207, 0.0
          %v1272 = vmax.f32 %v1208, 0.0
          %v1273 = vmax.f32 %v1209, 0.0
          %v1274 = vmax.f32 %v1210, 0.0
          %v1275 = vmax.f32 %v1211, 0.0
          %v1276 = vmax.f32 %v1212, 0.0
          %v1277 = vmax.f32 %v1213, 0.0
          %v1278 = vmax.f32 %v1214, 0.0
          %v1279 = vmax.f32 %v1215, 0.0
          %v1280 = vmax.f32 %v1216, 0.0
          %v1281 = vmax.f32 %v1217, 0.0
          %v1282 = vmax.f32 %v1218, 0.0
          %v1283 = vmax.f32 %v1219, 0.0
          %v1284 = vmax.f32 %v1220, 0.0
          %v1285 = vmax.f32 %v1221, 0.0
          %v1286 = vmax.f32 %v1222, 0.0
          %v1287 = vmax.f32 %v1223, 0.0
          %v1288 = vmax.f32 %v1224, 0.0
          %v1289 = vmax.f32 %v1225, 0.0
          %v1290 = vmax.f32 %v1226, 0.0
          %v1291 = vmax.f32 %v1227, 0.0
          %v1292 = vmax.f32 %v1228, 0.0
          %v1293 = vmax.f32 %v1229, 0.0
          %v1294 = vmax.f32 %v1230, 0.0
          %v1295 = vmax.f32 %v1231, 0.0
          %v1296 = vmax.f32 %v1232, 0.0
          %v1297 = vmax.f32 %v1233, 0.0
          %v1298 = vmax.f32 %v1234, 0.0
          %v1299 = vmax.f32 %v1235, 0.0
          %v1300 = vmax.f32 %v1236, 0.0
          %v1301 = vmax.f32 %v1237, 0.0
          %v1302 = vmax.f32 %v1238, 0.0
          %v1303 = vmax.f32 %v1239, 0.0
          %v1304 = vmax.f32 %v1240, 0.0
          %v1305 = vmax.f32 %v1241, 0.0
          %v1306 = vmax.f32 %v1242, 0.0
          %v1307 = vmax.f32 %v1243, 0.0
          %v1308 = vmax.f32 %v1244, 0.0
          %v1309 = vmax.f32 %v1245, 0.0
          %v1310 = vmax.f32 %v1246, 0.0
          %v1311 = vmax.f32 %v1247, 0.0
          %v1312 = vmax.f32 %v1248, 0.0
          %v1313 = vmax.f32 %v1249, 0.0
          %v1314 = vmax.f32 %v1250, 0.0
          %v1315 = vmax.f32 %v1251, 0.0
          %v1316 = vmax.f32 %v1252, 0.0
          %v1317 = vmax.f32 %v1253, 0.0
          %v1318 = vmax.f32 %v1254, 0.0
          %v1319 = vmax.f32 %v1255, 0.0
          %v1320 = vmax.f32 %v1256, 0.0
          %v1321 = vmax.f32 %v1257, 0.0
          %v1322 = vmax.f32 %v1258, 0.0
          %v1323 = vmax.f32 %v1259, 0.0
          %v1324 = vmax.f32 %v1260, 0.0
          %v1325 = vmax.f32 %v1261, 0.0
          %v1326 = vmax.f32 %v1262, 0.0
          %v1327 = vmax.f32 %v1263, 0.0
          %v1328 = vmax.f32 %v1264, 0.0
          %v1329 = vmax.f32 %v1265, 0.0
          %v1330 = vmax.f32 %v1266, 0.0
          %v1331 = vmax.f32 %v1267, 0.0
          %v1332 = vmax.f32 %v1268, 0.0
          %v1333 = vpack.c.bf16 %v1270, %v1269
          %v1334 = vpack.c.bf16 %v1272, %v1271
          %v1335 = vpack.c.bf16 %v1274, %v1273
          %v1336 = vpack.c.bf16 %v1276, %v1275
          %v1337 = vpack.c.bf16 %v1278, %v1277
          %v1338 = vpack.c.bf16 %v1280, %v1279
          %v1339 = vpack.c.bf16 %v1282, %v1281
          %v1340 = vpack.c.bf16 %v1284, %v1283
          %v1341 = vpack.c.bf16 %v1286, %v1285
          %v1342 = vpack.c.bf16 %v1288, %v1287
          %v1343 = vpack.c.bf16 %v1290, %v1289
          %v1344 = vpack.c.bf16 %v1292, %v1291
          %v1345 = vpack.c.bf16 %v1294, %v1293
          %v1346 = vpack.c.bf16 %v1296, %v1295
          %v1347 = vpack.c.bf16 %v1298, %v1297
          %v1348 = vpack.c.bf16 %v1300, %v1299
          %v1349 = vpack.c.bf16 %v1302, %v1301
          %v1350 = vpack.c.bf16 %v1304, %v1303
          %v1351 = vpack.c.bf16 %v1306, %v1305
          %v1352 = vpack.c.bf16 %v1308, %v1307
          %v1353 = vpack.c.bf16 %v1310, %v1309
          %v1354 = vpack.c.bf16 %v1312, %v1311
          %v1355 = vpack.c.bf16 %v1314, %v1313
          %v1356 = vpack.c.bf16 %v1316, %v1315
          %v1357 = vpack.c.bf16 %v1318, %v1317
          %v1358 = vpack.c.bf16 %v1320, %v1319
          %v1359 = vpack.c.bf16 %v1322, %v1321
          %v1360 = vpack.c.bf16 %v1324, %v1323
          %v1361 = vpack.c.bf16 %v1326, %v1325
          %v1362 = vpack.c.bf16 %v1328, %v1327
          %v1363 = vpack.c.bf16 %v1330, %v1329
          %v1364 = vpack.c.bf16 %v1332, %v1331
          %v1397 = vunpack.c.l.b16 %v1333
          %v1398 = vunpack.c.h.b16 %v1333
          %v1399 = vunpack.c.l.b16 %v1334
          %v1400 = vunpack.c.h.b16 %v1334
          %v1401 = vunpack.c.l.b16 %v1335
          %v1402 = vunpack.c.h.b16 %v1335
          %v1403 = vunpack.c.l.b16 %v1336
          %v1404 = vunpack.c.h.b16 %v1336
          %v1405 = vunpack.c.l.b16 %v1337
          %v1406 = vunpack.c.h.b16 %v1337
          %v1407 = vunpack.c.l.b16 %v1338
          %v1408 = vunpack.c.h.b16 %v1338
          %v1409 = vunpack.c.l.b16 %v1339
          %v1410 = vunpack.c.h.b16 %v1339
          %v1411 = vunpack.c.l.b16 %v1340
          %v1412 = vunpack.c.h.b16 %v1340
          %v1413 = vunpack.c.l.b16 %v1341
          %v1414 = vunpack.c.h.b16 %v1341
          %v1415 = vunpack.c.l.b16 %v1342
          %v1416 = vunpack.c.h.b16 %v1342
          %v1417 = vunpack.c.l.b16 %v1343
          %v1418 = vunpack.c.h.b16 %v1343
          %v1419 = vunpack.c.l.b16 %v1344
          %v1420 = vunpack.c.h.b16 %v1344
          %v1421 = vunpack.c.l.b16 %v1345
          %v1422 = vunpack.c.h.b16 %v1345
          %v1423 = vunpack.c.l.b16 %v1346
          %v1424 = vunpack.c.h.b16 %v1346
          %v1425 = vunpack.c.l.b16 %v1347
          %v1426 = vunpack.c.h.b16 %v1347
          %v1427 = vunpack.c.l.b16 %v1348
          %v1428 = vunpack.c.h.b16 %v1348
          %v1429 = vunpack.c.l.b16 %v1349
          %v1430 = vunpack.c.h.b16 %v1349
          %v1431 = vunpack.c.l.b16 %v1350
          %v1432 = vunpack.c.h.b16 %v1350
          %v1433 = vunpack.c.l.b16 %v1351
          %v1434 = vunpack.c.h.b16 %v1351
          %v1435 = vunpack.c.l.b16 %v1352
          %v1436 = vunpack.c.h.b16 %v1352
          %v1437 = vunpack.c.l.b16 %v1353
          %v1438 = vunpack.c.h.b16 %v1353
          %v1439 = vunpack.c.l.b16 %v1354
          %v1440 = vunpack.c.h.b16 %v1354
          %v1441 = vunpack.c.l.b16 %v1355
          %v1442 = vunpack.c.h.b16 %v1355
          %v1443 = vunpack.c.l.b16 %v1356
          %v1444 = vunpack.c.h.b16 %v1356
          %v1445 = vunpack.c.l.b16 %v1357
          %v1446 = vunpack.c.h.b16 %v1357
          %v1447 = vunpack.c.l.b16 %v1358
          %v1448 = vunpack.c.h.b16 %v1358
          %v1449 = vunpack.c.l.b16 %v1359
          %v1450 = vunpack.c.h.b16 %v1359
          %v1451 = vunpack.c.l.b16 %v1360
          %v1452 = vunpack.c.h.b16 %v1360
          %v1453 = vunpack.c.l.b16 %v1361
          %v1454 = vunpack.c.h.b16 %v1361
          %v1455 = vunpack.c.l.b16 %v1362
          %v1456 = vunpack.c.h.b16 %v1362
          %v1457 = vunpack.c.l.b16 %v1363
          %v1458 = vunpack.c.h.b16 %v1363
          %v1459 = vunpack.c.l.b16 %v1364
          %v1460 = vunpack.c.h.b16 %v1364
          %v1461 = vpack.c.b16 %v1397, %v1397
          %v1462 = vpack.c.b16 %v1398, %v1398
          %v1463 = vpack.c.b16 %v1399, %v1399
          %v1464 = vpack.c.b16 %v1400, %v1400
          %v1465 = vpack.c.b16 %v1401, %v1401
          %v1466 = vpack.c.b16 %v1402, %v1402
          %v1467 = vpack.c.b16 %v1403, %v1403
          %v1468 = vpack.c.b16 %v1404, %v1404
          %v1469 = vpack.c.b16 %v1405, %v1405
          %v1470 = vpack.c.b16 %v1406, %v1406
          %v1471 = vpack.c.b16 %v1407, %v1407
          %v1472 = vpack.c.b16 %v1408, %v1408
          %v1473 = vpack.c.b16 %v1409, %v1409
          %v1474 = vpack.c.b16 %v1410, %v1410
          %v1475 = vpack.c.b16 %v1411, %v1411
          %v1476 = vpack.c.b16 %v1412, %v1412
          %v1477 = vpack.c.b16 %v1413, %v1413
          %v1478 = vpack.c.b16 %v1414, %v1414
          %v1479 = vpack.c.b16 %v1415, %v1415
          %v1480 = vpack.c.b16 %v1416, %v1416
          %v1481 = vpack.c.b16 %v1417, %v1417
          %v1482 = vpack.c.b16 %v1418, %v1418
          %v1483 = vpack.c.b16 %v1419, %v1419
          %v1484 = vpack.c.b16 %v1420, %v1420
          %v1485 = vpack.c.b16 %v1421, %v1421
          %v1486 = vpack.c.b16 %v1422, %v1422
          %v1487 = vpack.c.b16 %v1423, %v1423
          %v1488 = vpack.c.b16 %v1424, %v1424
          %v1489 = vpack.c.b16 %v1425, %v1425
          %v1490 = vpack.c.b16 %v1426, %v1426
          %v1491 = vpack.c.b16 %v1427, %v1427
          %v1492 = vpack.c.b16 %v1428, %v1428
          %v1493 = vpack.c.b16 %v1429, %v1429
          %v1494 = vpack.c.b16 %v1430, %v1430
          %v1495 = vpack.c.b16 %v1431, %v1431
          %v1496 = vpack.c.b16 %v1432, %v1432
          %v1497 = vpack.c.b16 %v1433, %v1433
          %v1498 = vpack.c.b16 %v1434, %v1434
          %v1499 = vpack.c.b16 %v1435, %v1435
          %v1500 = vpack.c.b16 %v1436, %v1436
          %v1501 = vpack.c.b16 %v1437, %v1437
          %v1502 = vpack.c.b16 %v1438, %v1438
          %v1503 = vpack.c.b16 %v1439, %v1439
          %v1504 = vpack.c.b16 %v1440, %v1440
          %v1505 = vpack.c.b16 %v1441, %v1441
          %v1506 = vpack.c.b16 %v1442, %v1442
          %v1507 = vpack.c.b16 %v1443, %v1443
          %v1508 = vpack.c.b16 %v1444, %v1444
          %v1509 = vpack.c.b16 %v1445, %v1445
          %v1510 = vpack.c.b16 %v1446, %v1446
          %v1511 = vpack.c.b16 %v1447, %v1447
          %v1512 = vpack.c.b16 %v1448, %v1448
          %v1513 = vpack.c.b16 %v1449, %v1449
          %v1514 = vpack.c.b16 %v1450, %v1450
          %v1515 = vpack.c.b16 %v1451, %v1451
          %v1516 = vpack.c.b16 %v1452, %v1452
          %v1517 = vpack.c.b16 %v1453, %v1453
          %v1518 = vpack.c.b16 %v1454, %v1454
          %v1519 = vpack.c.b16 %v1455, %v1455
          %v1520 = vpack.c.b16 %v1456, %v1456
          %v1521 = vpack.c.b16 %v1457, %v1457
          %v1522 = vpack.c.b16 %v1458, %v1458
          %v1523 = vpack.c.b16 %v1459, %v1459
          %v1524 = vpack.c.b16 %v1460, %v1460
          %1589 = vst [vmem:[%s257] sm:$0xf] %v1461
          %1590 = vst [vmem:[%s257 + $0x4] sm:$0xf] %v1462
          %1591 = vst [vmem:[%s257 + $0x8] sm:$0xf] %v1463
          %1592 = vst [vmem:[%s257 + $0xc] sm:$0xf] %v1464
          %1593 = vst [vmem:[%s257 + $0x10] sm:$0xf] %v1465
          %1594 = vst [vmem:[%s257 + $0x14] sm:$0xf] %v1466
          %1595 = vst [vmem:[%s257 + $0x18] sm:$0xf] %v1467
          %1596 = vst [vmem:[%s257 + $0x1c] sm:$0xf] %v1468
          %1597 = vst [vmem:[%s257 + $0x20] sm:$0xf] %v1469
          %1598 = vst [vmem:[%s257 + $0x24] sm:$0xf] %v1470
          %1599 = vst [vmem:[%s257 + $0x28] sm:$0xf] %v1471
          %1600 = vst [vmem:[%s257 + $0x2c] sm:$0xf] %v1472
          %1601 = vst [vmem:[%s257 + $0x30] sm:$0xf] %v1473
          %1602 = vst [vmem:[%s257 + $0x34] sm:$0xf] %v1474
          %1603 = vst [vmem:[%s257 + $0x38] sm:$0xf] %v1475
          %1604 = vst [vmem:[%s257 + $0x3c] sm:$0xf] %v1476
          %1605 = vst [vmem:[%s257 + $0x40] sm:$0xf] %v1477
          %1606 = vst [vmem:[%s257 + $0x44] sm:$0xf] %v1478
          %1607 = vst [vmem:[%s257 + $0x48] sm:$0xf] %v1479
          %1608 = vst [vmem:[%s257 + $0x4c] sm:$0xf] %v1480
          %1609 = vst [vmem:[%s257 + $0x50] sm:$0xf] %v1481
          %1610 = vst [vmem:[%s257 + $0x54] sm:$0xf] %v1482
          %1611 = vst [vmem:[%s257 + $0x58] sm:$0xf] %v1483
          %1612 = vst [vmem:[%s257 + $0x5c] sm:$0xf] %v1484
          %1613 = vst [vmem:[%s257 + $0x60] sm:$0xf] %v1485
          %1614 = vst [vmem:[%s257 + $0x64] sm:$0xf] %v1486
          %1615 = vst [vmem:[%s257 + $0x68] sm:$0xf] %v1487
          %1616 = vst [vmem:[%s257 + $0x6c] sm:$0xf] %v1488
          %1617 = vst [vmem:[%s257 + $0x70] sm:$0xf] %v1489
          %1618 = vst [vmem:[%s257 + $0x74] sm:$0xf] %v1490
          %1619 = vst [vmem:[%s257 + $0x78] sm:$0xf] %v1491
          %1620 = vst [vmem:[%s257 + $0x7c] sm:$0xf] %v1492
          %1621 = vst [vmem:[%s257 + $0x80] sm:$0xf] %v1493
          %1622 = vst [vmem:[%s257 + $0x84] sm:$0xf] %v1494
          %1623 = vst [vmem:[%s257 + $0x88] sm:$0xf] %v1495
          %1624 = vst [vmem:[%s257 + $0x8c] sm:$0xf] %v1496
          %1625 = vst [vmem:[%s257 + $0x90] sm:$0xf] %v1497
          %1626 = vst [vmem:[%s257 + $0x94] sm:$0xf] %v1498
          %1627 = vst [vmem:[%s257 + $0x98] sm:$0xf] %v1499
          %1628 = vst [vmem:[%s257 + $0x9c] sm:$0xf] %v1500
          %1629 = vst [vmem:[%s257 + $0xa0] sm:$0xf] %v1501
          %1630 = vst [vmem:[%s257 + $0xa4] sm:$0xf] %v1502
          %1631 = vst [vmem:[%s257 + $0xa8] sm:$0xf] %v1503
          %1632 = vst [vmem:[%s257 + $0xac] sm:$0xf] %v1504
          %1633 = vst [vmem:[%s257 + $0xb0] sm:$0xf] %v1505
          %1634 = vst [vmem:[%s257 + $0xb4] sm:$0xf] %v1506
          %1635 = vst [vmem:[%s257 + $0xb8] sm:$0xf] %v1507
          %1636 = vst [vmem:[%s257 + $0xbc] sm:$0xf] %v1508
          %1637 = vst [vmem:[%s257 + $0xc0] sm:$0xf] %v1509
          %1638 = vst [vmem:[%s257 + $0xc4] sm:$0xf] %v1510
          %1639 = vst [vmem:[%s257 + $0xc8] sm:$0xf] %v1511
          %1640 = vst [vmem:[%s257 + $0xcc] sm:$0xf] %v1512
          %1641 = vst [vmem:[%s257 + $0xd0] sm:$0xf] %v1513
          %1642 = vst [vmem:[%s257 + $0xd4] sm:$0xf] %v1514
          %1643 = vst [vmem:[%s257 + $0xd8] sm:$0xf] %v1515
          %1644 = vst [vmem:[%s257 + $0xdc] sm:$0xf] %v1516
          %1645 = vst [vmem:[%s257 + $0xe0] sm:$0xf] %v1517
          %1646 = vst [vmem:[%s257 + $0xe4] sm:$0xf] %v1518
          %1647 = vst [vmem:[%s257 + $0xe8] sm:$0xf] %v1519
          %1648 = vst [vmem:[%s257 + $0xec] sm:$0xf] %v1520
          %1649 = vst [vmem:[%s257 + $0xf0] sm:$0xf] %v1521
          %1650 = vst [vmem:[%s257 + $0xf4] sm:$0xf] %v1522
          %1651 = vst [vmem:[%s257 + $0xf8] sm:$0xf] %v1523
          %1652 = vst [vmem:[%s257 + $0xfc] sm:$0xf] %v1524
        $region52: #{tpu_custom_call.1} parent=31 // pred_fallthru
          _
        %s1653 = sand.u32 %s132, 1
        %s1654 = scalar_lea.sflag [#allocation5], %s1653
        %s1655 = sand.u32 %s132, 1
        %s1656 = smul.addr %s1655, 256
        %s1657 = scalar_lea.vmem [#allocation9], %s1656
        // Predicated region
        $region53: #{tpu_custom_call.1} parent=31 // pred_check
          %p1658 = pneg %p142
        $region54: #{tpu_custom_call.1} parent=31 // pred_check_branch
          %1660 = sbr.rel (%p1658) target = $region56
        $region55: #{tpu_custom_call.1} parent=31 // pred_region
          %s1661 = smul.u32 64, %s26
          %s1663 = ssub.s32 4096, 4096
          %1664 = vsyncadd %s1654, %s1663
          %s1665 = sadd.s32 %s27, %s1661
          %s1666 = smul.addr %s1665, 64
          %s1667 = scalar_lea.hbm %s3, %s1666
          %s1668 = sshll.u32 %s1657, 4
          %s1669 = int_to_ptr.vmem [resolvable:$true] %s1668
          %1674 = dma.vmem_to_hbm [thread:$0]  %s1669, 4096, %s1667, %s1654, 64, 64, 4
        $region56: #{tpu_custom_call.1} parent=31 // pred_fallthru
          _
      $region32: #{tpu_custom_call.1} parent=5 // pred_fallthru
        _
      %p1675 = scmp.le.s32.totalorder 2, %s16
      // Predicated region
      $region57: #{tpu_custom_call.1} parent=5 // pred_check
        %p1676 = pneg %p1675
      $region58: #{tpu_custom_call.1} parent=5 // pred_check_branch
        %1678 = sbr.rel (%p1676) target = $region60
      $region59: #{tpu_custom_call.1} parent=5 // pred_region
        %s1679 = ssub.s32 %s16, 2
        // Predicated region
        $region61: #{tpu_custom_call.1} parent=59 // pred_check
          %p1680 = pneg %p148
        $region62: #{tpu_custom_call.1} parent=59 // pred_check_branch
          %1682 = sbr.rel (%p1680) target = $region64
        $region63: #{tpu_custom_call.1} parent=59 // pred_region
          %s1683 = sand.u32 %s133, 1
          %s1684 = scalar_lea.sflag [#allocation5], %s1683
          %s1685 = sand.u32 %s133, 1
          %s1686 = smul.addr %s1685, 256
          %s1687 = scalar_lea.vmem [#allocation9], %s1686
          %1688 = dma.done %s1684, 4096
        $region64: #{tpu_custom_call.1} parent=59 // pred_fallthru
          _
      $region60: #{tpu_custom_call.1} parent=5 // pred_fallthru
        _
    $region6: #{tpu_custom_call.1} parent=1 // loop_footer
      %s20 = sadd.s32 1, %s16
    $region7: #{tpu_custom_call.1} parent=1 // loop_footer_branch
      %15 = sbr.rel target = $region3
    $region8: #{tpu_custom_call.1} parent=1 // loop_exit
      _
    %1689 = vsyncpa [#allocation4], 1
    %s1690 = scalar_lea.sflag [#allocation4], 1
    %1691 = vsyncpa %s1690, 1
    %1692 = vsyncpa [#allocation7], 1
    %1693 = vsyncpa [#allocation5], 1
    %s1694 = scalar_lea.sflag [#allocation5], 1
    %1695 = vsyncpa %s1694, 1

</llo_original>
